<compile_context>
chip_gen: v7x
topology: tpu7x:2x2x1
jax: 0.10.0
libtpu: 0.0.40
codegen_flags: <defaults>
</compile_context>

<pallas_src>
import math
import jax
import jax.numpy as jnp
from jax.experimental import pallas as pl
from jax.experimental.pallas import tpu as pltpu


# ----------------------------------------------------------------------------
# Fused Pallas kernel
# ----------------------------------------------------------------------------
def _make_fused_kernel(B, S, D, H, DFF, L):
    M = H * S            # packed key/head axis (head-major: m = h*S + j)
    BS = B * S
    eps = 1e-5
    f32, bf16 = jnp.float32, jnp.bfloat16

    def layernorm(y, g, b):
        mu = jnp.mean(y, axis=-1, keepdims=True)
        yc = y - mu
        var = jnp.mean(yc * yc, axis=-1, keepdims=True)
        return yc * jax.lax.rsqrt(var + eps) * g + b

    def mm(a_bf, w_bf):   # bf16 x bf16 operands, f32 accumulation on the MXU
        return jnp.dot(a_bf, w_bf, preferred_element_type=f32)

    def kernel(x_ref, w4_ref, v9_ref, w1_ref, b1_ref, w2_ref,
               selt_ref, rmat_ref, wfc_ref, bfc_ref, o_ref):
        selt = selt_ref[...]                                    # (H, D) bf16 0/1
        rmat = rmat_ref[...]                                    # (M, H) bf16 0/1
        # hoisted once: broadcast of the head mask used by the K/V expansions
        selt_b = jnp.broadcast_to(selt[None, :, None, :], (B, H, S, D))

        xf = x_ref[...]                                         # (B*S, D) f32

        for l in range(L):        # static unroll; all weights VMEM-resident
            wl = w4_ref[l]                                      # (4, D, D) bf16
            vl = v9_ref[l]                                      # (9, D)    f32
            bq, bk, bv, bo = vl[0:1], vl[1:2], vl[2:3], vl[3:4]
            g1, be1        = vl[4:5], vl[5:6]
            b2, g2, be2    = vl[6:7], vl[7:8], vl[8:9]

            # ---- Q/K/V projections (wq/bq pre-scaled by 1/sqrt(HD) in wrapper)
            xf_bf = xf.astype(bf16)          # single cast, reused 3x
            q = mm(xf_bf, wl[0]) + bq                           # (BS, D) f32
            k = mm(xf_bf, wl[1]) + bk
            v = mm(xf_bf, wl[2]) + bv

            q3 = q.reshape(B, S, D).astype(bf16)
            k3 = k.reshape(B, S, D).astype(bf16)
            v3 = v.reshape(B, S, D).astype(bf16)

            # ---- lane-packed multi-head attention, packed key axis M = H*S
            # kexp[b, h*S+j, d] = k[b,j,d] if head(d)==h else 0   (same for v)
            kexp = (k3[:, None, :, :] * selt_b).reshape(B, M, D)
            vexp = (v3[:, None, :, :] * selt_b).reshape(B, M, D)

            # scores[b,q,h*S+j] = sum_{d in head h} q[b,q,d] * k[b,j,d]
            s = jnp.einsum('bqd,bmd->bqm', q3, kexp,
                           preferred_element_type=f32)          # (B, S, M) f32

            # softmax over keys per head; shared per-row shift is exact
            rm = jnp.max(s, axis=-1, keepdims=True)
            p = jnp.exp(s - rm)                                 # unnormalized
            p_bf = p.astype(bf16)
            denom = jnp.dot(p_bf.reshape(BS, M), rmat,
                            preferred_element_type=f32)         # (BS, H)
            recip = pl.reciprocal(denom, approx=True).astype(bf16)   # EUP

            # ctx[b,q,d] = (sum_j p[b,q,head(d)*S+j] * v[b,j,d]) / denom[..,head(d)]
            ctx_un = jnp.einsum('bqm,bmd->bqd', p_bf, vexp,
                                preferred_element_type=f32)     # (B, S, D)
            rec_d = jnp.dot(recip, selt, preferred_element_type=f32)  # (BS, D)
            ctx = ctx_un.reshape(BS, D) * rec_d

            attn = mm(ctx.astype(bf16), wl[3]) + bo             # out_proj
            # dropout1 identity (eval mode); post-norm
            h1 = layernorm(xf + attn, g1, be1)                  # (BS, D) f32

            # ---- feed-forward (ReLU); dropout2 identity
            ff = jnp.maximum(mm(h1.astype(bf16), w1_ref[l]) + b1_ref[l], 0.0)
            ff = mm(ff.astype(bf16), w2_ref[l]) + b2
            xf = layernorm(h1 + ff, g2, be2)

        # ---- mean-pool over sequence + FC(D -> 1): VPU multiply + lane reduce
        pooled = jnp.mean(xf.reshape(B, S, D), axis=1)          # (B, D)
        o_ref[...] = (jnp.sum(pooled * wfc_ref[...], axis=-1, keepdims=True)
                      + bfc_ref[...])

    return kernel


def transformer_forward_pallas(x, layers, wfc, bfc, H):
    B, S, D = x.shape
    L = len(layers)
    DFF = layers[0]["w1"].shape[1]
    HD = D // H
    scale = 1.0 / math.sqrt(HD)
    f32, bf16 = jnp.float32, jnp.bfloat16

    def as_bf(w, s=1.0):
        return (w.astype(f32) * s).astype(bf16)

    def vec(p, name, s=1.0):
        return (p[name].astype(f32) * s).reshape(D)

    # (L, 4, D, D): [wq * 1/sqrt(HD), wk, wv, wo]   (bf16 MXU operands)
    w4 = jnp.stack([jnp.stack([as_bf(p["wq"], scale), as_bf(p["wk"]),
                               as_bf(p["wv"]), as_bf(p["wo"])]) for p in layers])
    # (L, 9, D): [bq * 1/sqrt(HD), bk, bv, bo, g1, be1, b2, g2, be2]   (f32)
    v9 = jnp.stack([jnp.stack([vec(p, "bq", scale), vec(p, "bk"), vec(p, "bv"),
                               vec(p, "bo"), vec(p, "g1"), vec(p, "be1"),
                               vec(p, "b2"), vec(p, "g2"), vec(p, "be2")])
                    for p in layers])
    w1 = jnp.stack([as_bf(p["w1"]) for p in layers])                       # (L, D, DFF)
    b1 = jnp.stack([p["b1"].astype(f32).reshape(1, DFF) for p in layers])  # (L, 1, DFF)
    w2 = jnp.stack([as_bf(p["w2"]) for p in layers])                       # (L, DFF, D)

    # head-selection / per-head key-reduction matrices (exact 0/1, bf16)
    selt = (jnp.arange(D)[None, :] // HD == jnp.arange(H)[:, None]).astype(bf16)  # (H, D)
    rmat = jnp.repeat(jnp.eye(H, dtype=bf16), S, axis=0)                          # (H*S, H)

    xf = x.reshape(B * S, D).astype(f32)       # layout plumbing in the wrapper

    kernel = _make_fused_kernel(B, S, D, H, DFF, L)
    args = [xf, w4, v9, w1, b1, w2, selt, rmat,
            wfc.astype(f32), bfc.astype(f32)]

    def fullspec(a):
        nd = a.ndim
        return pl.BlockSpec(a.shape, lambda i, _nd=nd: (0,) * _nd)

    return pl.pallas_call(
        kernel,
        out_shape=jax.ShapeDtypeStruct((B, 1), jnp.float32),
        grid=(1,),                    # single step: whole batch, all layers
        in_specs=[fullspec(a) for a in args],
        out_specs=pl.BlockSpec((B, 1), lambda i: (0, 0)),
        compiler_params=pltpu.CompilerParams(
            dimension_semantics=("arbitrary",)),
    )(*args)


# ----------------------------------------------------------------------------
# Parameter init (deterministic, synthetic) + pure-JAX reference
# ----------------------------------------------------------------------------
def init_params(key, D, H, DFF, num_layers):
    def w_bf16(k, shape):
        return (jax.random.normal(k, shape, jnp.float32) * 0.05).astype(jnp.bfloat16)

    def b_f32(k, shape):
        return jax.random.normal(k, shape, jnp.float32) * 0.05

    layers = []
    for l in range(num_layers):
        ks = jax.random.split(jax.random.fold_in(key, l), 12)
        layers.append({
            "wq": w_bf16(ks[0], (D, D)),   "bq": b_f32(ks[1], (1, D)),
            "wk": w_bf16(ks[2], (D, D)),   "bk": b_f32(ks[3], (1, D)),
            "wv": w_bf16(ks[4], (D, D)),   "bv": b_f32(ks[5], (1, D)),
            "wo": w_bf16(ks[6], (D, D)),   "bo": b_f32(ks[7], (1, D)),
            "g1": jnp.ones((1, D), jnp.float32),
            "be1": jnp.zeros((1, D), jnp.float32),
            "w1": w_bf16(ks[8], (D, DFF)), "b1": b_f32(ks[9], (1, DFF)),
            "w2": w_bf16(ks[10], (DFF, D)), "b2": b_f32(ks[11], (1, D)),
            "g2": jnp.ones((1, D), jnp.float32),
            "be2": jnp.zeros((1, D), jnp.float32),
        })
    kfc = jax.random.fold_in(key, 999)
    wfc = jax.random.normal(kfc, (1, D), jnp.float32) * 0.05   # row vector (out=1)
    bfc = jnp.zeros((1, 1), jnp.float32)
    return layers, wfc, bfc


def transformer_forward_ref(x, layers, wfc, bfc, H):
    def ln(y, g, b):
        mu = y.mean(-1, keepdims=True)
        yc = y - mu
        var = (yc * yc).mean(-1, keepdims=True)
        return yc / jnp.sqrt(var + 1e-5) * g + b

    B, S, D = x.shape
    HD = D // H
    f32 = jnp.float32
    for p in layers:
        q = x @ p["wq"].astype(f32) + p["bq"]
        k = x @ p["wk"].astype(f32) + p["bk"]
        v = x @ p["wv"].astype(f32) + p["bv"]
        q = q.reshape(B, S, H, HD)
        k = k.reshape(B, S, H, HD)
        v = v.reshape(B, S, H, HD)
        s = jnp.einsum("bqhd,bkhd->bhqk", q, k) / math.sqrt(HD)
        a = jax.nn.softmax(s, axis=-1)
        ctx = jnp.einsum("bhqk,bkhd->bqhd", a, v).reshape(B, S, D)
        attn = ctx @ p["wo"].astype(f32) + p["bo"]
        h1 = ln(x + attn, p["g1"], p["be1"])
        ff = jax.nn.relu(h1 @ p["w1"].astype(f32) + p["b1"]) @ p["w2"].astype(f32) + p["b2"]
        x = ln(h1 + ff, p["g2"], p["be2"])
    pooled = x.mean(axis=1)
    return pooled @ wfc.T + bfc


# ----------------------------------------------------------------------------
if __name__ == "__main__":
    # feature_size divisible by 9 heads, as the module requires.
    B, S, D, H, DFF, NUM_LAYERS = 2, 8, 36, 9, 128, 2

    key = jax.random.PRNGKey(0)
    kx, kp = jax.random.split(key)
    x = jax.random.normal(kx, (B, S, D), jnp.float32)
    layers, wfc, bfc = init_params(kp, D, H, DFF, NUM_LAYERS)

    out = transformer_forward_pallas(x, layers, wfc, bfc, H)
    out = jax.block_until_ready(out)

    ref = transformer_forward_ref(x, layers, wfc, bfc, H)
    assert out.shape == (B, 1), out.shape
    # bf16 matmul operands (f32 accumulation) + approx reciprocal -> compare at
    # a bf16-appropriate tolerance against the f32 reference.
    assert jnp.allclose(out, ref, rtol=2e-2, atol=2e-2), (out, ref)

    print("KERNEL_OK")
</pallas_src>

<mosaic_0001>
module attributes {stable_mosaic.version = 11 : i64} {
  func.func @kernel(%arg0: i32, %arg1: memref<16x36xf32, #tpu.memory_space<vmem>>, %arg2: memref<2x4x36x36xbf16, #tpu.memory_space<vmem>>, %arg3: memref<2x9x36xf32, #tpu.memory_space<vmem>>, %arg4: memref<2x36x128xbf16, #tpu.memory_space<vmem>>, %arg5: memref<2x1x128xf32, #tpu.memory_space<vmem>>, %arg6: memref<2x128x36xbf16, #tpu.memory_space<vmem>>, %arg7: memref<9x36xbf16, #tpu.memory_space<vmem>>, %arg8: memref<72x9xbf16, #tpu.memory_space<vmem>>, %arg9: memref<1x36xf32, #tpu.memory_space<vmem>>, %arg10: memref<1x1xf32, #tpu.memory_space<vmem>>, %arg11: memref<2x1xf32, #tpu.memory_space<vmem>>) attributes {dimension_semantics = [#tpu.dimension_semantics<arbitrary>], iteration_bounds = array<i64: 1>, scalar_prefetch = 0 : i64, scratch_operands = 0 : i64, tpu.core_type = #tpu.core_type<tc>, window_params = [{pipeline_mode = #tpu.pipeline_mode<synchronous>, transform_indices = @transform_0, window_bounds = array<i64: 16, 36>}, {pipeline_mode = #tpu.pipeline_mode<synchronous>, transform_indices = @transform_1, window_bounds = array<i64: 2, 4, 36, 36>}, {pipeline_mode = #tpu.pipeline_mode<synchronous>, transform_indices = @transform_2, window_bounds = array<i64: 2, 9, 36>}, {pipeline_mode = #tpu.pipeline_mode<synchronous>, transform_indices = @transform_3, window_bounds = array<i64: 2, 36, 128>}, {pipeline_mode = #tpu.pipeline_mode<synchronous>, transform_indices = @transform_4, window_bounds = array<i64: 2, 1, 128>}, {pipeline_mode = #tpu.pipeline_mode<synchronous>, transform_indices = @transform_5, window_bounds = array<i64: 2, 128, 36>}, {pipeline_mode = #tpu.pipeline_mode<synchronous>, transform_indices = @transform_6, window_bounds = array<i64: 9, 36>}, {pipeline_mode = #tpu.pipeline_mode<synchronous>, transform_indices = @transform_7, window_bounds = array<i64: 72, 9>}, {pipeline_mode = #tpu.pipeline_mode<synchronous>, transform_indices = @transform_8, window_bounds = array<i64: 1, 36>}, {pipeline_mode = #tpu.pipeline_mode<synchronous>, transform_indices = @transform_9, window_bounds = array<i64: 1, 1>}, {pipeline_mode = #tpu.pipeline_mode<synchronous>, transform_indices = @transform_10, window_bounds = array<i64: 2, 1>}]} {
    %c0 = arith.constant 0 : index
    %c0_0 = arith.constant 0 : index
    %0 = vector.load %arg7[%c0, %c0_0] : memref<9x36xbf16, #tpu.memory_space<vmem>>, vector<9x36xbf16>
    %c0_1 = arith.constant 0 : index
    %c0_2 = arith.constant 0 : index
    %1 = vector.load %arg8[%c0_1, %c0_2] : memref<72x9xbf16, #tpu.memory_space<vmem>>, vector<72x9xbf16>
    %2 = vector.shape_cast %0 : vector<9x36xbf16> to vector<1x9x1x36xbf16>
    %3 = vector.shape_cast %2 : vector<1x9x1x36xbf16> to vector<1x9x1x36xbf16>
    %4 = vector.broadcast %3 : vector<1x9x1x36xbf16> to vector<2x9x8x36xbf16>
    %c0_3 = arith.constant 0 : index
    %c0_4 = arith.constant 0 : index
    %5 = vector.load %arg1[%c0_3, %c0_4] : memref<16x36xf32, #tpu.memory_space<vmem>>, vector<16x36xf32>
    %c0_5 = arith.constant 0 : index
    %c0_6 = arith.constant 0 : index
    %c0_7 = arith.constant 0 : index
    %c0_8 = arith.constant 0 : index
    %6 = vector.load %arg2[%c0_5, %c0_6, %c0_7, %c0_8] : memref<2x4x36x36xbf16, #tpu.memory_space<vmem>>, vector<1x4x36x36xbf16>
    %7 = vector.shape_cast %6 : vector<1x4x36x36xbf16> to vector<4x36x36xbf16>
    %c0_9 = arith.constant 0 : index
    %c0_10 = arith.constant 0 : index
    %c0_11 = arith.constant 0 : index
    %8 = vector.load %arg3[%c0_9, %c0_10, %c0_11] : memref<2x9x36xf32, #tpu.memory_space<vmem>>, vector<1x9x36xf32>
    %9 = vector.shape_cast %8 : vector<1x9x36xf32> to vector<9x36xf32>
    %10 = vector.extract_strided_slice %9 {offsets = [0, 0], sizes = [1, 36], strides = [1, 1]} : vector<9x36xf32> to vector<1x36xf32>
    %11 = vector.extract_strided_slice %9 {offsets = [1, 0], sizes = [1, 36], strides = [1, 1]} : vector<9x36xf32> to vector<1x36xf32>
    %12 = vector.extract_strided_slice %9 {offsets = [2, 0], sizes = [1, 36], strides = [1, 1]} : vector<9x36xf32> to vector<1x36xf32>
    %13 = vector.extract_strided_slice %9 {offsets = [3, 0], sizes = [1, 36], strides = [1, 1]} : vector<9x36xf32> to vector<1x36xf32>
    %14 = vector.extract_strided_slice %9 {offsets = [4, 0], sizes = [1, 36], strides = [1, 1]} : vector<9x36xf32> to vector<1x36xf32>
    %15 = vector.extract_strided_slice %9 {offsets = [5, 0], sizes = [1, 36], strides = [1, 1]} : vector<9x36xf32> to vector<1x36xf32>
    %16 = vector.extract_strided_slice %9 {offsets = [6, 0], sizes = [1, 36], strides = [1, 1]} : vector<9x36xf32> to vector<1x36xf32>
    %17 = vector.extract_strided_slice %9 {offsets = [7, 0], sizes = [1, 36], strides = [1, 1]} : vector<9x36xf32> to vector<1x36xf32>
    %18 = vector.extract_strided_slice %9 {offsets = [8, 0], sizes = [1, 36], strides = [1, 1]} : vector<9x36xf32> to vector<1x36xf32>
    %19 = arith.truncf %5 : vector<16x36xf32> to vector<16x36xbf16>
    %20 = vector.extract_strided_slice %7 {offsets = [0, 0, 0], sizes = [1, 36, 36], strides = [1, 1, 1]} : vector<4x36x36xbf16> to vector<1x36x36xbf16>
    %21 = vector.shape_cast %20 : vector<1x36x36xbf16> to vector<36x36xbf16>
    %cst = arith.constant dense<0.000000e+00> : vector<16x36xf32>
    %22 = tpu.matmul %19, %21, %cst {dimension_numbers = #tpu.dot_dimension_numbers<[1], [0], [0], [1], [0, 0, 1, 1], [], []>} : vector<16x36xbf16>, vector<36x36xbf16>, vector<16x36xf32> -> vector<16x36xf32>
    %23 = vector.broadcast %10 : vector<1x36xf32> to vector<16x36xf32>
    %24 = arith.addf %22, %23 : vector<16x36xf32>
    %25 = vector.extract_strided_slice %7 {offsets = [1, 0, 0], sizes = [1, 36, 36], strides = [1, 1, 1]} : vector<4x36x36xbf16> to vector<1x36x36xbf16>
    %26 = vector.shape_cast %25 : vector<1x36x36xbf16> to vector<36x36xbf16>
    %cst_12 = arith.constant dense<0.000000e+00> : vector<16x36xf32>
    %27 = tpu.matmul %19, %26, %cst_12 {dimension_numbers = #tpu.dot_dimension_numbers<[1], [0], [0], [1], [0, 0, 1, 1], [], []>} : vector<16x36xbf16>, vector<36x36xbf16>, vector<16x36xf32> -> vector<16x36xf32>
    %28 = vector.broadcast %11 : vector<1x36xf32> to vector<16x36xf32>
    %29 = arith.addf %27, %28 : vector<16x36xf32>
    %30 = vector.extract_strided_slice %7 {offsets = [2, 0, 0], sizes = [1, 36, 36], strides = [1, 1, 1]} : vector<4x36x36xbf16> to vector<1x36x36xbf16>
    %31 = vector.shape_cast %30 : vector<1x36x36xbf16> to vector<36x36xbf16>
    %cst_13 = arith.constant dense<0.000000e+00> : vector<16x36xf32>
    %32 = tpu.matmul %19, %31, %cst_13 {dimension_numbers = #tpu.dot_dimension_numbers<[1], [0], [0], [1], [0, 0, 1, 1], [], []>} : vector<16x36xbf16>, vector<36x36xbf16>, vector<16x36xf32> -> vector<16x36xf32>
    %33 = vector.broadcast %12 : vector<1x36xf32> to vector<16x36xf32>
    %34 = arith.addf %32, %33 : vector<16x36xf32>
    %35 = vector.shape_cast %24 : vector<16x36xf32> to vector<2x8x36xf32>
    %36 = arith.truncf %35 : vector<2x8x36xf32> to vector<2x8x36xbf16>
    %37 = vector.shape_cast %29 : vector<16x36xf32> to vector<2x8x36xf32>
    %38 = arith.truncf %37 : vector<2x8x36xf32> to vector<2x8x36xbf16>
    %39 = vector.shape_cast %34 : vector<16x36xf32> to vector<2x8x36xf32>
    %40 = arith.truncf %39 : vector<2x8x36xf32> to vector<2x8x36xbf16>
    %41 = vector.shape_cast %38 : vector<2x8x36xbf16> to vector<2x1x8x36xbf16>
    %42 = vector.broadcast %41 : vector<2x1x8x36xbf16> to vector<2x9x8x36xbf16>
    %43 = arith.mulf %42, %4 : vector<2x9x8x36xbf16>
    %44 = vector.shape_cast %43 : vector<2x9x8x36xbf16> to vector<2x72x36xbf16>
    %45 = vector.shape_cast %40 : vector<2x8x36xbf16> to vector<2x1x8x36xbf16>
    %46 = vector.broadcast %45 : vector<2x1x8x36xbf16> to vector<2x9x8x36xbf16>
    %47 = arith.mulf %46, %4 : vector<2x9x8x36xbf16>
    %48 = vector.shape_cast %47 : vector<2x9x8x36xbf16> to vector<2x72x36xbf16>
    "tpu.trace_start"() <{level = 10 : i32, message = "bqd,bmd->bqm"}> : () -> ()
    %cst_14 = arith.constant dense<0.000000e+00> : vector<2x8x72xf32>
    %49 = tpu.matmul %36, %44, %cst_14 {dimension_numbers = #tpu.dot_dimension_numbers<[2], [2], [1], [1], [0, 0, 0, 1, 1, 1], [0], [0]>} : vector<2x8x36xbf16>, vector<2x72x36xbf16>, vector<2x8x72xf32> -> vector<2x8x72xf32>
    "tpu.trace_stop"() : () -> ()
    %cst_15 = arith.constant dense<0xFF800000> : vector<2x8xf32>
    %50 = vector.multi_reduction <maximumf>, %49, %cst_15 [2] : vector<2x8x72xf32> to vector<2x8xf32>
    %51 = vector.shape_cast %50 : vector<2x8xf32> to vector<2x8x1xf32>
    %52 = vector.broadcast %51 : vector<2x8x1xf32> to vector<2x8x72xf32>
    %53 = arith.subf %49, %52 : vector<2x8x72xf32>
    %54 = math.exp %53 : vector<2x8x72xf32>
    %55 = arith.truncf %54 : vector<2x8x72xf32> to vector<2x8x72xbf16>
    %56 = vector.shape_cast %55 : vector<2x8x72xbf16> to vector<16x72xbf16>
    %cst_16 = arith.constant dense<0.000000e+00> : vector<16x9xf32>
    %57 = tpu.matmul %56, %1, %cst_16 {dimension_numbers = #tpu.dot_dimension_numbers<[1], [0], [0], [1], [0, 0, 1, 1], [], []>} : vector<16x72xbf16>, vector<72x9xbf16>, vector<16x9xf32> -> vector<16x9xf32>
    %58 = tpu.reciprocal %57 {approx = true} : vector<16x9xf32> -> vector<16x9xf32>
    %59 = arith.truncf %58 : vector<16x9xf32> to vector<16x9xbf16>
    "tpu.trace_start"() <{level = 10 : i32, message = "bqm,bmd->bqd"}> : () -> ()
    %cst_17 = arith.constant dense<0.000000e+00> : vector<2x8x36xf32>
    %60 = tpu.matmul %55, %48, %cst_17 {dimension_numbers = #tpu.dot_dimension_numbers<[2], [1], [1], [2], [0, 0, 0, 1, 1, 2], [0], [0]>} : vector<2x8x72xbf16>, vector<2x72x36xbf16>, vector<2x8x36xf32> -> vector<2x8x36xf32>
    "tpu.trace_stop"() : () -> ()
    %cst_18 = arith.constant dense<0.000000e+00> : vector<16x36xf32>
    %61 = tpu.matmul %59, %0, %cst_18 {dimension_numbers = #tpu.dot_dimension_numbers<[1], [0], [0], [1], [0, 0, 1, 1], [], []>} : vector<16x9xbf16>, vector<9x36xbf16>, vector<16x36xf32> -> vector<16x36xf32>
    %62 = vector.shape_cast %60 : vector<2x8x36xf32> to vector<16x36xf32>
    %63 = arith.mulf %62, %61 : vector<16x36xf32>
    %64 = arith.truncf %63 : vector<16x36xf32> to vector<16x36xbf16>
    %65 = vector.extract_strided_slice %7 {offsets = [3, 0, 0], sizes = [1, 36, 36], strides = [1, 1, 1]} : vector<4x36x36xbf16> to vector<1x36x36xbf16>
    %66 = vector.shape_cast %65 : vector<1x36x36xbf16> to vector<36x36xbf16>
    %cst_19 = arith.constant dense<0.000000e+00> : vector<16x36xf32>
    %67 = tpu.matmul %64, %66, %cst_19 {dimension_numbers = #tpu.dot_dimension_numbers<[1], [0], [0], [1], [0, 0, 1, 1], [], []>} : vector<16x36xbf16>, vector<36x36xbf16>, vector<16x36xf32> -> vector<16x36xf32>
    %68 = vector.broadcast %13 : vector<1x36xf32> to vector<16x36xf32>
    %69 = arith.addf %67, %68 : vector<16x36xf32>
    %70 = arith.addf %5, %69 : vector<16x36xf32>
    %cst_20 = arith.constant dense<0.000000e+00> : vector<16xf32>
    %71 = vector.multi_reduction <add>, %70, %cst_20 [1] : vector<16x36xf32> to vector<16xf32>
    %72 = vector.shape_cast %71 : vector<16xf32> to vector<16x1xf32>
    %cst_21 = arith.constant 3.600000e+01 : f32
    %73 = vector.broadcast %cst_21 : f32 to vector<16x1xf32>
    %74 = arith.divf %72, %73 : vector<16x1xf32>
    %75 = vector.broadcast %74 : vector<16x1xf32> to vector<16x36xf32>
    %76 = arith.subf %70, %75 : vector<16x36xf32>
    %77 = arith.mulf %76, %76 : vector<16x36xf32>
    %cst_22 = arith.constant dense<0.000000e+00> : vector<16xf32>
    %78 = vector.multi_reduction <add>, %77, %cst_22 [1] : vector<16x36xf32> to vector<16xf32>
    %79 = vector.shape_cast %78 : vector<16xf32> to vector<16x1xf32>
    %cst_23 = arith.constant 3.600000e+01 : f32
    %80 = vector.broadcast %cst_23 : f32 to vector<16x1xf32>
    %81 = arith.divf %79, %80 : vector<16x1xf32>
    %cst_24 = arith.constant 9.99999974E-6 : f32
    %82 = vector.broadcast %cst_24 : f32 to vector<16x1xf32>
    %83 = arith.addf %81, %82 : vector<16x1xf32>
    %84 = math.rsqrt %83 : vector<16x1xf32>
    %85 = vector.broadcast %84 : vector<16x1xf32> to vector<16x36xf32>
    %86 = arith.mulf %76, %85 : vector<16x36xf32>
    %87 = vector.broadcast %14 : vector<1x36xf32> to vector<16x36xf32>
    %88 = arith.mulf %86, %87 : vector<16x36xf32>
    %89 = vector.broadcast %15 : vector<1x36xf32> to vector<16x36xf32>
    %90 = arith.addf %88, %89 : vector<16x36xf32>
    %91 = arith.truncf %90 : vector<16x36xf32> to vector<16x36xbf16>
    %c0_25 = arith.constant 0 : index
    %c0_26 = arith.constant 0 : index
    %c0_27 = arith.constant 0 : index
    %92 = vector.load %arg4[%c0_25, %c0_26, %c0_27] : memref<2x36x128xbf16, #tpu.memory_space<vmem>>, vector<1x36x128xbf16>
    %93 = vector.shape_cast %92 : vector<1x36x128xbf16> to vector<36x128xbf16>
    %cst_28 = arith.constant dense<0.000000e+00> : vector<16x128xf32>
    %94 = tpu.matmul %91, %93, %cst_28 {dimension_numbers = #tpu.dot_dimension_numbers<[1], [0], [0], [1], [0, 0, 1, 1], [], []>} : vector<16x36xbf16>, vector<36x128xbf16>, vector<16x128xf32> -> vector<16x128xf32>
    %c0_29 = arith.constant 0 : index
    %c0_30 = arith.constant 0 : index
    %c0_31 = arith.constant 0 : index
    %95 = vector.load %arg5[%c0_29, %c0_30, %c0_31] : memref<2x1x128xf32, #tpu.memory_space<vmem>>, vector<1x1x128xf32>
    %96 = vector.shape_cast %95 : vector<1x1x128xf32> to vector<1x128xf32>
    %97 = vector.broadcast %96 : vector<1x128xf32> to vector<16x128xf32>
    %98 = arith.addf %94, %97 : vector<16x128xf32>
    %cst_32 = arith.constant 0.000000e+00 : f32
    %99 = vector.broadcast %cst_32 : f32 to vector<16x128xf32>
    %100 = arith.maximumf %98, %99 : vector<16x128xf32>
    %101 = arith.truncf %100 : vector<16x128xf32> to vector<16x128xbf16>
    %c0_33 = arith.constant 0 : index
    %c0_34 = arith.constant 0 : index
    %c0_35 = arith.constant 0 : index
    %102 = vector.load %arg6[%c0_33, %c0_34, %c0_35] : memref<2x128x36xbf16, #tpu.memory_space<vmem>>, vector<1x128x36xbf16>
    %103 = vector.shape_cast %102 : vector<1x128x36xbf16> to vector<128x36xbf16>
    %cst_36 = arith.constant dense<0.000000e+00> : vector<16x36xf32>
    %104 = tpu.matmul %101, %103, %cst_36 {dimension_numbers = #tpu.dot_dimension_numbers<[1], [0], [0], [1], [0, 0, 1, 1], [], []>} : vector<16x128xbf16>, vector<128x36xbf16>, vector<16x36xf32> -> vector<16x36xf32>
    %105 = vector.broadcast %16 : vector<1x36xf32> to vector<16x36xf32>
    %106 = arith.addf %104, %105 : vector<16x36xf32>
    %107 = arith.addf %90, %106 : vector<16x36xf32>
    %cst_37 = arith.constant dense<0.000000e+00> : vector<16xf32>
    %108 = vector.multi_reduction <add>, %107, %cst_37 [1] : vector<16x36xf32> to vector<16xf32>
    %109 = vector.shape_cast %108 : vector<16xf32> to vector<16x1xf32>
    %cst_38 = arith.constant 3.600000e+01 : f32
    %110 = vector.broadcast %cst_38 : f32 to vector<16x1xf32>
    %111 = arith.divf %109, %110 : vector<16x1xf32>
    %112 = vector.broadcast %111 : vector<16x1xf32> to vector<16x36xf32>
    %113 = arith.subf %107, %112 : vector<16x36xf32>
    %114 = arith.mulf %113, %113 : vector<16x36xf32>
    %cst_39 = arith.constant dense<0.000000e+00> : vector<16xf32>
    %115 = vector.multi_reduction <add>, %114, %cst_39 [1] : vector<16x36xf32> to vector<16xf32>
    %116 = vector.shape_cast %115 : vector<16xf32> to vector<16x1xf32>
    %cst_40 = arith.constant 3.600000e+01 : f32
    %117 = vector.broadcast %cst_40 : f32 to vector<16x1xf32>
    %118 = arith.divf %116, %117 : vector<16x1xf32>
    %cst_41 = arith.constant 9.99999974E-6 : f32
    %119 = vector.broadcast %cst_41 : f32 to vector<16x1xf32>
    %120 = arith.addf %118, %119 : vector<16x1xf32>
    %121 = math.rsqrt %120 : vector<16x1xf32>
    %122 = vector.broadcast %121 : vector<16x1xf32> to vector<16x36xf32>
    %123 = arith.mulf %113, %122 : vector<16x36xf32>
    %124 = vector.broadcast %17 : vector<1x36xf32> to vector<16x36xf32>
    %125 = arith.mulf %123, %124 : vector<16x36xf32>
    %126 = vector.broadcast %18 : vector<1x36xf32> to vector<16x36xf32>
    %127 = arith.addf %125, %126 : vector<16x36xf32>
    %c1 = arith.constant 1 : index
    %c0_42 = arith.constant 0 : index
    %c0_43 = arith.constant 0 : index
    %c0_44 = arith.constant 0 : index
    %128 = vector.load %arg2[%c1, %c0_42, %c0_43, %c0_44] : memref<2x4x36x36xbf16, #tpu.memory_space<vmem>>, vector<1x4x36x36xbf16>
    %129 = vector.shape_cast %128 : vector<1x4x36x36xbf16> to vector<4x36x36xbf16>
    %c1_45 = arith.constant 1 : index
    %c0_46 = arith.constant 0 : index
    %c0_47 = arith.constant 0 : index
    %130 = vector.load %arg3[%c1_45, %c0_46, %c0_47] : memref<2x9x36xf32, #tpu.memory_space<vmem>>, vector<1x9x36xf32>
    %131 = vector.shape_cast %130 : vector<1x9x36xf32> to vector<9x36xf32>
    %132 = vector.extract_strided_slice %131 {offsets = [0, 0], sizes = [1, 36], strides = [1, 1]} : vector<9x36xf32> to vector<1x36xf32>
    %133 = vector.extract_strided_slice %131 {offsets = [1, 0], sizes = [1, 36], strides = [1, 1]} : vector<9x36xf32> to vector<1x36xf32>
    %134 = vector.extract_strided_slice %131 {offsets = [2, 0], sizes = [1, 36], strides = [1, 1]} : vector<9x36xf32> to vector<1x36xf32>
    %135 = vector.extract_strided_slice %131 {offsets = [3, 0], sizes = [1, 36], strides = [1, 1]} : vector<9x36xf32> to vector<1x36xf32>
    %136 = vector.extract_strided_slice %131 {offsets = [4, 0], sizes = [1, 36], strides = [1, 1]} : vector<9x36xf32> to vector<1x36xf32>
    %137 = vector.extract_strided_slice %131 {offsets = [5, 0], sizes = [1, 36], strides = [1, 1]} : vector<9x36xf32> to vector<1x36xf32>
    %138 = vector.extract_strided_slice %131 {offsets = [6, 0], sizes = [1, 36], strides = [1, 1]} : vector<9x36xf32> to vector<1x36xf32>
    %139 = vector.extract_strided_slice %131 {offsets = [7, 0], sizes = [1, 36], strides = [1, 1]} : vector<9x36xf32> to vector<1x36xf32>
    %140 = vector.extract_strided_slice %131 {offsets = [8, 0], sizes = [1, 36], strides = [1, 1]} : vector<9x36xf32> to vector<1x36xf32>
    %141 = arith.truncf %127 : vector<16x36xf32> to vector<16x36xbf16>
    %142 = vector.extract_strided_slice %129 {offsets = [0, 0, 0], sizes = [1, 36, 36], strides = [1, 1, 1]} : vector<4x36x36xbf16> to vector<1x36x36xbf16>
    %143 = vector.shape_cast %142 : vector<1x36x36xbf16> to vector<36x36xbf16>
    %cst_48 = arith.constant dense<0.000000e+00> : vector<16x36xf32>
    %144 = tpu.matmul %141, %143, %cst_48 {dimension_numbers = #tpu.dot_dimension_numbers<[1], [0], [0], [1], [0, 0, 1, 1], [], []>} : vector<16x36xbf16>, vector<36x36xbf16>, vector<16x36xf32> -> vector<16x36xf32>
    %145 = vector.broadcast %132 : vector<1x36xf32> to vector<16x36xf32>
    %146 = arith.addf %144, %145 : vector<16x36xf32>
    %147 = vector.extract_strided_slice %129 {offsets = [1, 0, 0], sizes = [1, 36, 36], strides = [1, 1, 1]} : vector<4x36x36xbf16> to vector<1x36x36xbf16>
    %148 = vector.shape_cast %147 : vector<1x36x36xbf16> to vector<36x36xbf16>
    %cst_49 = arith.constant dense<0.000000e+00> : vector<16x36xf32>
    %149 = tpu.matmul %141, %148, %cst_49 {dimension_numbers = #tpu.dot_dimension_numbers<[1], [0], [0], [1], [0, 0, 1, 1], [], []>} : vector<16x36xbf16>, vector<36x36xbf16>, vector<16x36xf32> -> vector<16x36xf32>
    %150 = vector.broadcast %133 : vector<1x36xf32> to vector<16x36xf32>
    %151 = arith.addf %149, %150 : vector<16x36xf32>
    %152 = vector.extract_strided_slice %129 {offsets = [2, 0, 0], sizes = [1, 36, 36], strides = [1, 1, 1]} : vector<4x36x36xbf16> to vector<1x36x36xbf16>
    %153 = vector.shape_cast %152 : vector<1x36x36xbf16> to vector<36x36xbf16>
    %cst_50 = arith.constant dense<0.000000e+00> : vector<16x36xf32>
    %154 = tpu.matmul %141, %153, %cst_50 {dimension_numbers = #tpu.dot_dimension_numbers<[1], [0], [0], [1], [0, 0, 1, 1], [], []>} : vector<16x36xbf16>, vector<36x36xbf16>, vector<16x36xf32> -> vector<16x36xf32>
    %155 = vector.broadcast %134 : vector<1x36xf32> to vector<16x36xf32>
    %156 = arith.addf %154, %155 : vector<16x36xf32>
    %157 = vector.shape_cast %146 : vector<16x36xf32> to vector<2x8x36xf32>
    %158 = arith.truncf %157 : vector<2x8x36xf32> to vector<2x8x36xbf16>
    %159 = vector.shape_cast %151 : vector<16x36xf32> to vector<2x8x36xf32>
    %160 = arith.truncf %159 : vector<2x8x36xf32> to vector<2x8x36xbf16>
    %161 = vector.shape_cast %156 : vector<16x36xf32> to vector<2x8x36xf32>
    %162 = arith.truncf %161 : vector<2x8x36xf32> to vector<2x8x36xbf16>
    %163 = vector.shape_cast %160 : vector<2x8x36xbf16> to vector<2x1x8x36xbf16>
    %164 = vector.broadcast %163 : vector<2x1x8x36xbf16> to vector<2x9x8x36xbf16>
    %165 = arith.mulf %164, %4 : vector<2x9x8x36xbf16>
    %166 = vector.shape_cast %165 : vector<2x9x8x36xbf16> to vector<2x72x36xbf16>
    %167 = vector.shape_cast %162 : vector<2x8x36xbf16> to vector<2x1x8x36xbf16>
    %168 = vector.broadcast %167 : vector<2x1x8x36xbf16> to vector<2x9x8x36xbf16>
    %169 = arith.mulf %168, %4 : vector<2x9x8x36xbf16>
    %170 = vector.shape_cast %169 : vector<2x9x8x36xbf16> to vector<2x72x36xbf16>
    "tpu.trace_start"() <{level = 10 : i32, message = "bqd,bmd->bqm"}> : () -> ()
    %cst_51 = arith.constant dense<0.000000e+00> : vector<2x8x72xf32>
    %171 = tpu.matmul %158, %166, %cst_51 {dimension_numbers = #tpu.dot_dimension_numbers<[2], [2], [1], [1], [0, 0, 0, 1, 1, 1], [0], [0]>} : vector<2x8x36xbf16>, vector<2x72x36xbf16>, vector<2x8x72xf32> -> vector<2x8x72xf32>
    "tpu.trace_stop"() : () -> ()
    %cst_52 = arith.constant dense<0xFF800000> : vector<2x8xf32>
    %172 = vector.multi_reduction <maximumf>, %171, %cst_52 [2] : vector<2x8x72xf32> to vector<2x8xf32>
    %173 = vector.shape_cast %172 : vector<2x8xf32> to vector<2x8x1xf32>
    %174 = vector.broadcast %173 : vector<2x8x1xf32> to vector<2x8x72xf32>
    %175 = arith.subf %171, %174 : vector<2x8x72xf32>
    %176 = math.exp %175 : vector<2x8x72xf32>
    %177 = arith.truncf %176 : vector<2x8x72xf32> to vector<2x8x72xbf16>
    %178 = vector.shape_cast %177 : vector<2x8x72xbf16> to vector<16x72xbf16>
    %cst_53 = arith.constant dense<0.000000e+00> : vector<16x9xf32>
    %179 = tpu.matmul %178, %1, %cst_53 {dimension_numbers = #tpu.dot_dimension_numbers<[1], [0], [0], [1], [0, 0, 1, 1], [], []>} : vector<16x72xbf16>, vector<72x9xbf16>, vector<16x9xf32> -> vector<16x9xf32>
    %180 = tpu.reciprocal %179 {approx = true} : vector<16x9xf32> -> vector<16x9xf32>
    %181 = arith.truncf %180 : vector<16x9xf32> to vector<16x9xbf16>
    "tpu.trace_start"() <{level = 10 : i32, message = "bqm,bmd->bqd"}> : () -> ()
    %cst_54 = arith.constant dense<0.000000e+00> : vector<2x8x36xf32>
    %182 = tpu.matmul %177, %170, %cst_54 {dimension_numbers = #tpu.dot_dimension_numbers<[2], [1], [1], [2], [0, 0, 0, 1, 1, 2], [0], [0]>} : vector<2x8x72xbf16>, vector<2x72x36xbf16>, vector<2x8x36xf32> -> vector<2x8x36xf32>
    "tpu.trace_stop"() : () -> ()
    %cst_55 = arith.constant dense<0.000000e+00> : vector<16x36xf32>
    %183 = tpu.matmul %181, %0, %cst_55 {dimension_numbers = #tpu.dot_dimension_numbers<[1], [0], [0], [1], [0, 0, 1, 1], [], []>} : vector<16x9xbf16>, vector<9x36xbf16>, vector<16x36xf32> -> vector<16x36xf32>
    %184 = vector.shape_cast %182 : vector<2x8x36xf32> to vector<16x36xf32>
    %185 = arith.mulf %184, %183 : vector<16x36xf32>
    %186 = arith.truncf %185 : vector<16x36xf32> to vector<16x36xbf16>
    %187 = vector.extract_strided_slice %129 {offsets = [3, 0, 0], sizes = [1, 36, 36], strides = [1, 1, 1]} : vector<4x36x36xbf16> to vector<1x36x36xbf16>
    %188 = vector.shape_cast %187 : vector<1x36x36xbf16> to vector<36x36xbf16>
    %cst_56 = arith.constant dense<0.000000e+00> : vector<16x36xf32>
    %189 = tpu.matmul %186, %188, %cst_56 {dimension_numbers = #tpu.dot_dimension_numbers<[1], [0], [0], [1], [0, 0, 1, 1], [], []>} : vector<16x36xbf16>, vector<36x36xbf16>, vector<16x36xf32> -> vector<16x36xf32>
    %190 = vector.broadcast %135 : vector<1x36xf32> to vector<16x36xf32>
    %191 = arith.addf %189, %190 : vector<16x36xf32>
    %192 = arith.addf %127, %191 : vector<16x36xf32>
    %cst_57 = arith.constant dense<0.000000e+00> : vector<16xf32>
    %193 = vector.multi_reduction <add>, %192, %cst_57 [1] : vector<16x36xf32> to vector<16xf32>
    %194 = vector.shape_cast %193 : vector<16xf32> to vector<16x1xf32>
    %cst_58 = arith.constant 3.600000e+01 : f32
    %195 = vector.broadcast %cst_58 : f32 to vector<16x1xf32>
    %196 = arith.divf %194, %195 : vector<16x1xf32>
    %197 = vector.broadcast %196 : vector<16x1xf32> to vector<16x36xf32>
    %198 = arith.subf %192, %197 : vector<16x36xf32>
    %199 = arith.mulf %198, %198 : vector<16x36xf32>
    %cst_59 = arith.constant dense<0.000000e+00> : vector<16xf32>
    %200 = vector.multi_reduction <add>, %199, %cst_59 [1] : vector<16x36xf32> to vector<16xf32>
    %201 = vector.shape_cast %200 : vector<16xf32> to vector<16x1xf32>
    %cst_60 = arith.constant 3.600000e+01 : f32
    %202 = vector.broadcast %cst_60 : f32 to vector<16x1xf32>
    %203 = arith.divf %201, %202 : vector<16x1xf32>
    %cst_61 = arith.constant 9.99999974E-6 : f32
    %204 = vector.broadcast %cst_61 : f32 to vector<16x1xf32>
    %205 = arith.addf %203, %204 : vector<16x1xf32>
    %206 = math.rsqrt %205 : vector<16x1xf32>
    %207 = vector.broadcast %206 : vector<16x1xf32> to vector<16x36xf32>
    %208 = arith.mulf %198, %207 : vector<16x36xf32>
    %209 = vector.broadcast %136 : vector<1x36xf32> to vector<16x36xf32>
    %210 = arith.mulf %208, %209 : vector<16x36xf32>
    %211 = vector.broadcast %137 : vector<1x36xf32> to vector<16x36xf32>
    %212 = arith.addf %210, %211 : vector<16x36xf32>
    %213 = arith.truncf %212 : vector<16x36xf32> to vector<16x36xbf16>
    %c1_62 = arith.constant 1 : index
    %c0_63 = arith.constant 0 : index
    %c0_64 = arith.constant 0 : index
    %214 = vector.load %arg4[%c1_62, %c0_63, %c0_64] : memref<2x36x128xbf16, #tpu.memory_space<vmem>>, vector<1x36x128xbf16>
    %215 = vector.shape_cast %214 : vector<1x36x128xbf16> to vector<36x128xbf16>
    %cst_65 = arith.constant dense<0.000000e+00> : vector<16x128xf32>
    %216 = tpu.matmul %213, %215, %cst_65 {dimension_numbers = #tpu.dot_dimension_numbers<[1], [0], [0], [1], [0, 0, 1, 1], [], []>} : vector<16x36xbf16>, vector<36x128xbf16>, vector<16x128xf32> -> vector<16x128xf32>
    %c1_66 = arith.constant 1 : index
    %c0_67 = arith.constant 0 : index
    %c0_68 = arith.constant 0 : index
    %217 = vector.load %arg5[%c1_66, %c0_67, %c0_68] : memref<2x1x128xf32, #tpu.memory_space<vmem>>, vector<1x1x128xf32>
    %218 = vector.shape_cast %217 : vector<1x1x128xf32> to vector<1x128xf32>
    %219 = vector.broadcast %218 : vector<1x128xf32> to vector<16x128xf32>
    %220 = arith.addf %216, %219 : vector<16x128xf32>
    %cst_69 = arith.constant 0.000000e+00 : f32
    %221 = vector.broadcast %cst_69 : f32 to vector<16x128xf32>
    %222 = arith.maximumf %220, %221 : vector<16x128xf32>
    %223 = arith.truncf %222 : vector<16x128xf32> to vector<16x128xbf16>
    %c1_70 = arith.constant 1 : index
    %c0_71 = arith.constant 0 : index
    %c0_72 = arith.constant 0 : index
    %224 = vector.load %arg6[%c1_70, %c0_71, %c0_72] : memref<2x128x36xbf16, #tpu.memory_space<vmem>>, vector<1x128x36xbf16>
    %225 = vector.shape_cast %224 : vector<1x128x36xbf16> to vector<128x36xbf16>
    %cst_73 = arith.constant dense<0.000000e+00> : vector<16x36xf32>
    %226 = tpu.matmul %223, %225, %cst_73 {dimension_numbers = #tpu.dot_dimension_numbers<[1], [0], [0], [1], [0, 0, 1, 1], [], []>} : vector<16x128xbf16>, vector<128x36xbf16>, vector<16x36xf32> -> vector<16x36xf32>
    %227 = vector.broadcast %138 : vector<1x36xf32> to vector<16x36xf32>
    %228 = arith.addf %226, %227 : vector<16x36xf32>
    %229 = arith.addf %212, %228 : vector<16x36xf32>
    %cst_74 = arith.constant dense<0.000000e+00> : vector<16xf32>
    %230 = vector.multi_reduction <add>, %229, %cst_74 [1] : vector<16x36xf32> to vector<16xf32>
    %231 = vector.shape_cast %230 : vector<16xf32> to vector<16x1xf32>
    %cst_75 = arith.constant 3.600000e+01 : f32
    %232 = vector.broadcast %cst_75 : f32 to vector<16x1xf32>
    %233 = arith.divf %231, %232 : vector<16x1xf32>
    %234 = vector.broadcast %233 : vector<16x1xf32> to vector<16x36xf32>
    %235 = arith.subf %229, %234 : vector<16x36xf32>
    %236 = arith.mulf %235, %235 : vector<16x36xf32>
    %cst_76 = arith.constant dense<0.000000e+00> : vector<16xf32>
    %237 = vector.multi_reduction <add>, %236, %cst_76 [1] : vector<16x36xf32> to vector<16xf32>
    %238 = vector.shape_cast %237 : vector<16xf32> to vector<16x1xf32>
    %cst_77 = arith.constant 3.600000e+01 : f32
    %239 = vector.broadcast %cst_77 : f32 to vector<16x1xf32>
    %240 = arith.divf %238, %239 : vector<16x1xf32>
    %cst_78 = arith.constant 9.99999974E-6 : f32
    %241 = vector.broadcast %cst_78 : f32 to vector<16x1xf32>
    %242 = arith.addf %240, %241 : vector<16x1xf32>
    %243 = math.rsqrt %242 : vector<16x1xf32>
    %244 = vector.broadcast %243 : vector<16x1xf32> to vector<16x36xf32>
    %245 = arith.mulf %235, %244 : vector<16x36xf32>
    %246 = vector.broadcast %139 : vector<1x36xf32> to vector<16x36xf32>
    %247 = arith.mulf %245, %246 : vector<16x36xf32>
    %248 = vector.broadcast %140 : vector<1x36xf32> to vector<16x36xf32>
    %249 = arith.addf %247, %248 : vector<16x36xf32>
    %250 = vector.shape_cast %249 : vector<16x36xf32> to vector<2x8x36xf32>
    %cst_79 = arith.constant dense<0.000000e+00> : vector<2x36xf32>
    %251 = vector.multi_reduction <add>, %250, %cst_79 [1] : vector<2x8x36xf32> to vector<2x36xf32>
    %cst_80 = arith.constant 8.000000e+00 : f32
    %252 = vector.broadcast %cst_80 : f32 to vector<2x36xf32>
    %253 = arith.divf %251, %252 : vector<2x36xf32>
    %c0_81 = arith.constant 0 : index
    %c0_82 = arith.constant 0 : index
    %254 = vector.load %arg9[%c0_81, %c0_82] : memref<1x36xf32, #tpu.memory_space<vmem>>, vector<1x36xf32>
    %255 = vector.broadcast %254 : vector<1x36xf32> to vector<2x36xf32>
    %256 = arith.mulf %253, %255 : vector<2x36xf32>
    %cst_83 = arith.constant dense<0.000000e+00> : vector<2xf32>
    %257 = vector.multi_reduction <add>, %256, %cst_83 [1] : vector<2x36xf32> to vector<2xf32>
    %258 = vector.shape_cast %257 : vector<2xf32> to vector<2x1xf32>
    %c0_84 = arith.constant 0 : index
    %c0_85 = arith.constant 0 : index
    %259 = vector.load %arg10[%c0_84, %c0_85] : memref<1x1xf32, #tpu.memory_space<vmem>>, vector<1x1xf32>
    %260 = vector.broadcast %259 : vector<1x1xf32> to vector<2x1xf32>
    %261 = arith.addf %258, %260 : vector<2x1xf32>
    %c0_86 = arith.constant 0 : index
    %c0_87 = arith.constant 0 : index
    %262 = vector.load %arg11[%c0_86, %c0_87] : memref<2x1xf32, #tpu.memory_space<vmem>>, vector<2x1xf32>
    tpu.vector_store %arg11[%c0_86, %c0_87], %261 {strides = array<i32>} : memref<2x1xf32, #tpu.memory_space<vmem>>, vector<2x1xf32>,
    return
  }
  func.func @transform_0(%arg0: i32) -> (i32, i32) {
    %c0_i32 = arith.constant 0 : i32
    %c0_i32_0 = arith.constant 0 : i32
    %c0_i32_1 = arith.constant 0 : i32
    return %c0_i32, %c0_i32_0 : i32, i32
  }
  func.func @transform_1(%arg0: i32) -> (i32, i32, i32, i32) {
    %c0_i32 = arith.constant 0 : i32
    %c0_i32_0 = arith.constant 0 : i32
    %c0_i32_1 = arith.constant 0 : i32
    %c0_i32_2 = arith.constant 0 : i32
    %c0_i32_3 = arith.constant 0 : i32
    return %c0_i32, %c0_i32_0, %c0_i32_1, %c0_i32_2 : i32, i32, i32, i32
  }
  func.func @transform_2(%arg0: i32) -> (i32, i32, i32) {
    %c0_i32 = arith.constant 0 : i32
    %c0_i32_0 = arith.constant 0 : i32
    %c0_i32_1 = arith.constant 0 : i32
    %c0_i32_2 = arith.constant 0 : i32
    return %c0_i32, %c0_i32_0, %c0_i32_1 : i32, i32, i32
  }
  func.func @transform_3(%arg0: i32) -> (i32, i32, i32) {
    %c0_i32 = arith.constant 0 : i32
    %c0_i32_0 = arith.constant 0 : i32
    %c0_i32_1 = arith.constant 0 : i32
    %c0_i32_2 = arith.constant 0 : i32
    return %c0_i32, %c0_i32_0, %c0_i32_1 : i32, i32, i32
  }
  func.func @transform_4(%arg0: i32) -> (i32, i32, i32) {
    %c0_i32 = arith.constant 0 : i32
    %c0_i32_0 = arith.constant 0 : i32
    %c0_i32_1 = arith.constant 0 : i32
    %c0_i32_2 = arith.constant 0 : i32
    return %c0_i32, %c0_i32_0, %c0_i32_1 : i32, i32, i32
  }
  func.func @transform_5(%arg0: i32) -> (i32, i32, i32) {
    %c0_i32 = arith.constant 0 : i32
    %c0_i32_0 = arith.constant 0 : i32
    %c0_i32_1 = arith.constant 0 : i32
    %c0_i32_2 = arith.constant 0 : i32
    return %c0_i32, %c0_i32_0, %c0_i32_1 : i32, i32, i32
  }
  func.func @transform_6(%arg0: i32) -> (i32, i32) {
    %c0_i32 = arith.constant 0 : i32
    %c0_i32_0 = arith.constant 0 : i32
    %c0_i32_1 = arith.constant 0 : i32
    return %c0_i32, %c0_i32_0 : i32, i32
  }
  func.func @transform_7(%arg0: i32) -> (i32, i32) {
    %c0_i32 = arith.constant 0 : i32
    %c0_i32_0 = arith.constant 0 : i32
    %c0_i32_1 = arith.constant 0 : i32
    return %c0_i32, %c0_i32_0 : i32, i32
  }
  func.func @transform_8(%arg0: i32) -> (i32, i32) {
    %c0_i32 = arith.constant 0 : i32
    %c0_i32_0 = arith.constant 0 : i32
    %c0_i32_1 = arith.constant 0 : i32
    return %c0_i32, %c0_i32_0 : i32, i32
  }
  func.func @transform_9(%arg0: i32) -> (i32, i32) {
    %c0_i32 = arith.constant 0 : i32
    %c0_i32_0 = arith.constant 0 : i32
    %c0_i32_1 = arith.constant 0 : i32
    return %c0_i32, %c0_i32_0 : i32, i32
  }
  func.func @transform_10(%arg0: i32) -> (i32, i32) {
    %c0_i32 = arith.constant 0 : i32
    %c0_i32_0 = arith.constant 0 : i32
    %c0_i32_1 = arith.constant 0 : i32
    return %c0_i32, %c0_i32_0 : i32, i32
  }
}

</mosaic_0001>

<llo_original>
// kernel: tpu_custom_call.1
$region0: #{tpu_custom_call.1}
  #allocation0 [shape = 'u32[]', space=smem, size = 0x4, offset = 0x4, fixed_abs, tag = 'smem constant byte address 0x4 - core index']
  #allocation1 [shape = 'u32[144,128]{1,0:T(1,128)}', space=vmem, size = 0x12000, scoped, tag = 'internal scratch']
  #allocation2 [shape = 'f32[1,1]{1,0:T(1,128)S(1)}', space=vmem, size = 0x200, scoped, tag = 'scoped memory for tpu_custom_call.1']
  %s0 = inlined_call_operand.vmem [shape: f32[16,36], index: 0, kind: input, shape index: {}]
  %s1 = inlined_call_operand.vmem [shape: bf16[2,4,36,36], index: 1, kind: input, shape index: {}]
  %s2 = inlined_call_operand.vmem [shape: f32[2,9,36], index: 2, kind: input, shape index: {}]
  %s3 = inlined_call_operand.vmem [shape: bf16[2,36,128], index: 3, kind: input, shape index: {}]
  %s4 = inlined_call_operand.vmem [shape: f32[2,1,128], index: 4, kind: input, shape index: {}]
  %s5 = inlined_call_operand.vmem [shape: bf16[2,128,36], index: 5, kind: input, shape index: {}]
  %s6 = inlined_call_operand.vmem [shape: bf16[9,36], index: 6, kind: input, shape index: {}]
  %s7 = inlined_call_operand.vmem [shape: bf16[72,9], index: 7, kind: input, shape index: {}]
  %s8 = inlined_call_operand.vmem [shape: f32[1,36], index: 8, kind: input, shape index: {}]
  %s9 = inlined_call_operand.<no memory space> [shape: f32[1,1], index: 9, kind: input, shape index: {}]
  %s10 = inlined_call_operand.vmem [shape: f32[2,1], index: 10, kind: output, shape index: {}]
  %s11 = sld [smem:[#allocation0]]
  $region50: #{tpu_custom_call.1} parent=0
    _
  %s13 = ssub.s32 1, %s11
  %s14 = scalar_select 0, %s13, %s11
  %v15 = vstv %s9
  %16 = vst [vmem:[#allocation2] sm:$0x1] %v15
  // Predicated region
  $region2: #{tpu_custom_call.1} parent=0 // pred_check
    _
  $region3: #{tpu_custom_call.1} parent=0 // pred_check_branch
    %18 = sbr.rel (0) target = $region5
  $region4: #{tpu_custom_call.1} parent=0 // pred_region
    _
  $region5: #{tpu_custom_call.1} parent=0 // pred_fallthru
    _
  // Predicated region
  $region6: #{tpu_custom_call.1} parent=0 // pred_check
    _
  $region7: #{tpu_custom_call.1} parent=0 // pred_check_branch
    %20 = sbr.rel (0) target = $region9
  $region8: #{tpu_custom_call.1} parent=0 // pred_region
    _
  $region9: #{tpu_custom_call.1} parent=0 // pred_fallthru
    _
  // Predicated region
  $region10: #{tpu_custom_call.1} parent=0 // pred_check
    _
  $region11: #{tpu_custom_call.1} parent=0 // pred_check_branch
    %22 = sbr.rel (0) target = $region13
  $region12: #{tpu_custom_call.1} parent=0 // pred_region
    _
  $region13: #{tpu_custom_call.1} parent=0 // pred_fallthru
    _
  // Predicated region
  $region14: #{tpu_custom_call.1} parent=0 // pred_check
    _
  $region15: #{tpu_custom_call.1} parent=0 // pred_check_branch
    %24 = sbr.rel (0) target = $region17
  $region16: #{tpu_custom_call.1} parent=0 // pred_region
    _
  $region17: #{tpu_custom_call.1} parent=0 // pred_fallthru
    _
  // Predicated region
  $region18: #{tpu_custom_call.1} parent=0 // pred_check
    _
  $region19: #{tpu_custom_call.1} parent=0 // pred_check_branch
    %26 = sbr.rel (0) target = $region21
  $region20: #{tpu_custom_call.1} parent=0 // pred_region
    _
  $region21: #{tpu_custom_call.1} parent=0 // pred_fallthru
    _
  // Predicated region
  $region22: #{tpu_custom_call.1} parent=0 // pred_check
    _
  $region23: #{tpu_custom_call.1} parent=0 // pred_check_branch
    %28 = sbr.rel (0) target = $region25
  $region24: #{tpu_custom_call.1} parent=0 // pred_region
    _
  $region25: #{tpu_custom_call.1} parent=0 // pred_fallthru
    _
  // Predicated region
  $region26: #{tpu_custom_call.1} parent=0 // pred_check
    _
  $region27: #{tpu_custom_call.1} parent=0 // pred_check_branch
    %30 = sbr.rel (0) target = $region29
  $region28: #{tpu_custom_call.1} parent=0 // pred_region
    _
  $region29: #{tpu_custom_call.1} parent=0 // pred_fallthru
    _
  // Predicated region
  $region30: #{tpu_custom_call.1} parent=0 // pred_check
    _
  $region31: #{tpu_custom_call.1} parent=0 // pred_check_branch
    %32 = sbr.rel (0) target = $region33
  $region32: #{tpu_custom_call.1} parent=0 // pred_region
    _
  $region33: #{tpu_custom_call.1} parent=0 // pred_fallthru
    _
  // Predicated region
  $region34: #{tpu_custom_call.1} parent=0 // pred_check
    _
  $region35: #{tpu_custom_call.1} parent=0 // pred_check_branch
    %34 = sbr.rel (0) target = $region37
  $region36: #{tpu_custom_call.1} parent=0 // pred_region
    _
  $region37: #{tpu_custom_call.1} parent=0 // pred_fallthru
    _
  // Predicated region
  $region38: #{tpu_custom_call.1} parent=0 // pred_check
    _
  $region39: #{tpu_custom_call.1} parent=0 // pred_check_branch
    %36 = sbr.rel (0) target = $region41
  $region40: #{tpu_custom_call.1} parent=0 // pred_region
    _
  $region41: #{tpu_custom_call.1} parent=0 // pred_fallthru
    _
  %v38 = vld [vmem:[%s6] sm:$0xf]
  %v39 = vld [vmem:[%s6 + $0x4] sm:$0x1]
  %v40 = vld [vmem:[%s7] sm:$0xf]
  %v41 = vld [vmem:[%s7 + $0x4] sm:$0xf]
  %v42 = vld [vmem:[%s7 + $0x8] sm:$0xf]
  %v43 = vld [vmem:[%s7 + $0xc] sm:$0xf]
  %v44 = vld [vmem:[%s7 + $0x10] sm:$0xf]
  %v45 = vld [vmem:[%s7 + $0x14] sm:$0xf]
  %v46 = vld [vmem:[%s7 + $0x18] sm:$0xf]
  %v47 = vld [vmem:[%s7 + $0x1c] sm:$0xf]
  %v48 = vld [vmem:[%s7 + $0x20] sm:$0xf]
  %v52 = vunpack.c.l.s4 1966171168
  %v53 = vunpack.c.0.s8 %v52
  %v54 = vlaneseq
  %v55 = vshrl.u32 %v54, 7
  %v56 = vsub.s32 %v53, %v55
  %v57 = vrot.slane %v38, %v56
  %v58 = vcombine.high %v57, %v57
  %v60 = vunpack.c.l.s4 1966171168
  %v61 = vunpack.c.0.s8 %v60
  %v62 = vlaneseq
  %v63 = vshrl.u32 %v62, 7
  %v64 = vsub.s32 %v61, %v63
  %v65 = vrot.slane %v57, %v64
  %v67 = vunpack.c.l.s4 1966171168
  %v68 = vunpack.c.0.s8 %v67
  %v69 = vlaneseq
  %v70 = vshrl.u32 %v69, 7
  %v71 = vsub.s32 %v68, %v70
  %v72 = vrot.slane %v58, %v71
  %v73 = vcombine.high %v65, %v65
  %v74 = vcombine.high %v72, %v72
  %v76 = vunpack.c.l.s4 1966171168
  %v77 = vunpack.c.0.s8 %v76
  %v78 = vlaneseq
  %v79 = vshrl.u32 %v78, 7
  %v80 = vsub.s32 %v77, %v79
  %v81 = vrot.slane %v39, %v80
  %v83 = vunpack.c.l.s4 1966171168
  %v84 = vunpack.c.0.s8 %v83
  %v85 = vlaneseq
  %v86 = vshrl.u32 %v85, 7
  %v87 = vsub.s32 %v84, %v86
  %v88 = vrot.slane %v81, %v87
  %v89 = vunpack.i.l.s16 %v65
  %v90 = vunpack.i.h.s16 %v65
  %v91 = vunpack.i.l.s16 %v72
  %v92 = vunpack.i.h.s16 %v72
  %v93 = vunpack.i.l.s16 %v73
  %v94 = vunpack.i.h.s16 %v73
  %v95 = vunpack.i.l.s16 %v74
  %v96 = vunpack.i.h.s16 %v74
  %v97 = vunpack.i.l.s16 %v88
  %v98 = vpack.i.b16 %v89, %v89
  %v99 = vpack.i.b16 %v90, %v90
  %v100 = vpack.i.b16 %v91, %v91
  %v101 = vpack.i.b16 %v92, %v92
  %v102 = vpack.i.b16 %v93, %v93
  %v103 = vpack.i.b16 %v94, %v94
  %v104 = vpack.i.b16 %v95, %v95
  %v105 = vpack.i.b16 %v96, %v96
  %v106 = vpack.i.b16 %v97, %v97
  %v107 = vlaneseq
  %v108 = vshrl.u32 %v107, 7
  %v109 = vsub.s32 0, %v108
  %v110 = vrot.slane %v98, %v109
  %v111 = vlaneseq
  %v112 = vshrl.u32 %v111, 7
  %v113 = vsub.s32 0, %v112
  %v114 = vrot.slane %v99, %v113
  %v115 = vlaneseq
  %v116 = vshrl.u32 %v115, 7
  %v117 = vsub.s32 0, %v116
  %v118 = vrot.slane %v100, %v117
  %v119 = vlaneseq
  %v120 = vshrl.u32 %v119, 7
  %v121 = vsub.s32 0, %v120
  %v122 = vrot.slane %v101, %v121
  %v123 = vlaneseq
  %v124 = vshrl.u32 %v123, 7
  %v125 = vsub.s32 0, %v124
  %v126 = vrot.slane %v102, %v125
  %v127 = vlaneseq
  %v128 = vshrl.u32 %v127, 7
  %v129 = vsub.s32 0, %v128
  %v130 = vrot.slane %v103, %v129
  %v131 = vlaneseq
  %v132 = vshrl.u32 %v131, 7
  %v133 = vsub.s32 0, %v132
  %v134 = vrot.slane %v104, %v133
  %v135 = vlaneseq
  %v136 = vshrl.u32 %v135, 7
  %v137 = vsub.s32 0, %v136
  %v138 = vrot.slane %v105, %v137
  %v139 = vlaneseq
  %v140 = vshrl.u32 %v139, 7
  %v141 = vsub.s32 0, %v140
  %v142 = vrot.slane %v106, %v141
  %v144 = vpack.i.b16 %v110, %v110
  %v146 = vlaneseq
  %v147 = vshrl.u32 %v146, 7
  %v148 = vsub.s32 0, %v147
  %v149 = vrot.slane %v144, %v148
  %v151 = vpack.i.b16 %v114, %v114
  %v153 = vlaneseq
  %v154 = vshrl.u32 %v153, 7
  %v155 = vsub.s32 0, %v154
  %v156 = vrot.slane %v151, %v155
  %v158 = vpack.i.b16 %v118, %v118
  %v160 = vlaneseq
  %v161 = vshrl.u32 %v160, 7
  %v162 = vsub.s32 0, %v161
  %v163 = vrot.slane %v158, %v162
  %v165 = vpack.i.b16 %v122, %v122
  %v167 = vlaneseq
  %v168 = vshrl.u32 %v167, 7
  %v169 = vsub.s32 0, %v168
  %v170 = vrot.slane %v165, %v169
  %v172 = vpack.i.b16 %v126, %v126
  %v174 = vlaneseq
  %v175 = vshrl.u32 %v174, 7
  %v176 = vsub.s32 0, %v175
  %v177 = vrot.slane %v172, %v176
  %v179 = vpack.i.b16 %v130, %v130
  %v181 = vlaneseq
  %v182 = vshrl.u32 %v181, 7
  %v183 = vsub.s32 0, %v182
  %v184 = vrot.slane %v179, %v183
  %v186 = vpack.i.b16 %v134, %v134
  %v188 = vlaneseq
  %v189 = vshrl.u32 %v188, 7
  %v190 = vsub.s32 0, %v189
  %v191 = vrot.slane %v186, %v190
  %v193 = vpack.i.b16 %v138, %v138
  %v195 = vlaneseq
  %v196 = vshrl.u32 %v195, 7
  %v197 = vsub.s32 0, %v196
  %v198 = vrot.slane %v193, %v197
  %v200 = vpack.i.b16 %v142, %v142
  %v202 = vlaneseq
  %v203 = vshrl.u32 %v202, 7
  %v204 = vsub.s32 0, %v203
  %v205 = vrot.slane %v200, %v204
  %v206 = vld [vmem:[%s0] sm:$0xff]
  %v207 = vld [vmem:[%s0 + $0x8] sm:$0xff]
  %v208 = vld [vmem:[%s1] sm:$0xf]
  %v209 = vld [vmem:[%s1 + $0x4] sm:$0xf]
  %v210 = vld [vmem:[%s1 + $0x8] sm:$0xf]
  %v211 = vld [vmem:[%s1 + $0xc] sm:$0xf]
  %v212 = vld [vmem:[%s1 + $0x10] sm:$0x3]
  %v213 = vld [vmem:[%s1 + $0x14] sm:$0xf]
  %v214 = vld [vmem:[%s1 + $0x18] sm:$0xf]
  %v215 = vld [vmem:[%s1 + $0x1c] sm:$0xf]
  %v216 = vld [vmem:[%s1 + $0x20] sm:$0xf]
  %v217 = vld [vmem:[%s1 + $0x24] sm:$0x3]
  %v218 = vld [vmem:[%s1 + $0x28] sm:$0xf]
  %v219 = vld [vmem:[%s1 + $0x2c] sm:$0xf]
  %v220 = vld [vmem:[%s1 + $0x30] sm:$0xf]
  %v221 = vld [vmem:[%s1 + $0x34] sm:$0xf]
  %v222 = vld [vmem:[%s1 + $0x38] sm:$0x3]
  %v223 = vld [vmem:[%s1 + $0x3c] sm:$0xf]
  %v224 = vld [vmem:[%s1 + $0x40] sm:$0xf]
  %v225 = vld [vmem:[%s1 + $0x44] sm:$0xf]
  %v226 = vld [vmem:[%s1 + $0x48] sm:$0xf]
  %v227 = vld [vmem:[%s1 + $0x4c] sm:$0x3]
  %v228 = vld [vmem:[%s2] sm:$0xff]
  %v229 = vld [vmem:[%s2 + $0x8] sm:$0x1]
  %v230 = vpack.c.bf16 %v207, %v206
  %v231 = vlaneseq
  %v232 = vshrl.u32 %v231, 7
  %v233 = vsub.s32 0, %v232
  %v234 = vrot.slane %v228, %v233
  %v240 = vunpack.c.l.b16 %v208
  %v241 = vunpack.c.l.b16 %v209
  %v242 = vunpack.c.l.b16 %v210
  %v243 = vunpack.c.l.b16 %v211
  %v244 = vunpack.c.l.b16 %v212
  %v245 = vpack.c.b16 %v241, %v240
  %v246 = vpack.c.b16 %v243, %v242
  %v247 = vpack.c.b16 %v244, %v244
  %vm250 = vcmask 293888
  %v252 = vsel %vm250, %v230, 0
  %vm254 = vcmask 1041408
  %v256 = vsel %vm254, %v247, 0
  %258 = vmatprep.subr.bf16.mxu0 0
  %259 = vmatpush1.bf16.msra.mxu0 %v245
  %260 = vmatprep.subr.bf16.mxu0 0
  %261 = vmatpush1.bf16.msra.mxu0 %v246
  %262 = vmatprep.subr.bf16.mxu0 0
  %263 = vmatpush1.bf16.msra.mxu0 %v256
  %264 = vmatprep.subr.bf16.mxu0 0
  %265 = vmatpush1.bf16.msra.mxu0 0
  %266 = vmatprep.subr.bf16.mxu0 0
  %267 = vmatpush1.bf16.msra.mxu0 0
  %268 = vmatprep.subr.bf16.mxu0 0
  %269 = vmatpush1.bf16.msra.mxu0 0
  %270 = vmatprep.subr.bf16.mxu0 0
  %271 = vmatpush1.bf16.msra.mxu0 0
  %272 = vmatprep.subr.bf16.mxu0 0
  %273 = vmatpush1.bf16.msra.mxu0 0
  %274 = vmatprep.subr.bf16.mxu0 0
  %275 = vmatpush1.bf16.msra.mxu0 0
  %276 = vmatprep.subr.bf16.mxu0 0
  %277 = vmatpush1.bf16.msra.mxu0 0
  %278 = vmatprep.subr.bf16.mxu0 0
  %279 = vmatpush1.bf16.msra.mxu0 0
  %280 = vmatprep.subr.bf16.mxu0 0
  %281 = vmatpush1.bf16.msra.mxu0 0
  %282 = vmatprep.subr.bf16.mxu0 0
  %283 = vmatpush1.bf16.msra.mxu0 0
  %284 = vmatprep.subr.bf16.mxu0 0
  %285 = vmatpush1.bf16.msra.mxu0 0
  %286 = vmatprep.subr.bf16.mxu0 0
  %287 = vmatpush1.bf16.msra.mxu0 0
  %288 = vmatprep.subr.bf16.mxu0 0
  %289 = vmatpush1.bf16.msra.mxu0 0
  %290 = vmatprep.mubr.bf16.mxu0 0
  %291 = vmatmul.mubr.bf16.gmra.mrb[0].mxu0 %v252
  %v292 = vpop.f32.mrb[0].mxu0
  %v293 = vadd.f32 %v234, %v292
  %v294 = vpop.f32.mrb[0].mxu0
  %v295 = vpop.f32.mrb[0].mxu0
  %v296 = vadd.f32 %v234, %v295
  %v297 = vpop.f32.mrb[0].mxu0
  %298 = vdwg.mxu0
  %v299 = vlaneseq
  %v300 = vshrl.u32 %v299, 7
  %v301 = vsub.s32 1, %v300
  %v302 = vrot.slane %v228, %v301
  %v308 = vunpack.c.l.b16 %v213
  %v309 = vunpack.c.l.b16 %v214
  %v310 = vunpack.c.l.b16 %v215
  %v311 = vunpack.c.l.b16 %v216
  %v312 = vunpack.c.l.b16 %v217
  %v313 = vpack.c.b16 %v309, %v308
  %v314 = vpack.c.b16 %v311, %v310
  %v315 = vpack.c.b16 %v312, %v312
  %v319 = vsel %vm254, %v315, 0
  %321 = vmatprep.subr.bf16.mxu0 0
  %322 = vmatpush1.bf16.msra.mxu0 %v313
  %323 = vmatprep.subr.bf16.mxu0 0
  %324 = vmatpush1.bf16.msra.mxu0 %v314
  %325 = vmatprep.subr.bf16.mxu0 0
  %326 = vmatpush1.bf16.msra.mxu0 %v319
  %327 = vmatprep.subr.bf16.mxu0 0
  %328 = vmatpush1.bf16.msra.mxu0 0
  %329 = vmatprep.subr.bf16.mxu0 0
  %330 = vmatpush1.bf16.msra.mxu0 0
  %331 = vmatprep.subr.bf16.mxu0 0
  %332 = vmatpush1.bf16.msra.mxu0 0
  %333 = vmatprep.subr.bf16.mxu0 0
  %334 = vmatpush1.bf16.msra.mxu0 0
  %335 = vmatprep.subr.bf16.mxu0 0
  %336 = vmatpush1.bf16.msra.mxu0 0
  %337 = vmatprep.subr.bf16.mxu0 0
  %338 = vmatpush1.bf16.msra.mxu0 0
  %339 = vmatprep.subr.bf16.mxu0 0
  %340 = vmatpush1.bf16.msra.mxu0 0
  %341 = vmatprep.subr.bf16.mxu0 0
  %342 = vmatpush1.bf16.msra.mxu0 0
  %343 = vmatprep.subr.bf16.mxu0 0
  %344 = vmatpush1.bf16.msra.mxu0 0
  %345 = vmatprep.subr.bf16.mxu0 0
  %346 = vmatpush1.bf16.msra.mxu0 0
  %347 = vmatprep.subr.bf16.mxu0 0
  %348 = vmatpush1.bf16.msra.mxu0 0
  %349 = vmatprep.subr.bf16.mxu0 0
  %350 = vmatpush1.bf16.msra.mxu0 0
  %351 = vmatprep.subr.bf16.mxu0 0
  %352 = vmatpush1.bf16.msra.mxu0 0
  %353 = vmatprep.mubr.bf16.mxu0 0
  %354 = vmatmul.mubr.bf16.gmra.mrb[0].mxu0 %v252
  %v355 = vpop.f32.mrb[0].mxu0
  %v356 = vadd.f32 %v302, %v355
  %v357 = vpop.f32.mrb[0].mxu0
  %v358 = vpop.f32.mrb[0].mxu0
  %v359 = vadd.f32 %v302, %v358
  %v360 = vpop.f32.mrb[0].mxu0
  %361 = vdwg.mxu0
  %v362 = vlaneseq
  %v363 = vshrl.u32 %v362, 7
  %v364 = vsub.s32 2, %v363
  %v365 = vrot.slane %v228, %v364
  %v371 = vunpack.c.l.b16 %v218
  %v372 = vunpack.c.l.b16 %v219
  %v373 = vunpack.c.l.b16 %v220
  %v374 = vunpack.c.l.b16 %v221
  %v375 = vunpack.c.l.b16 %v222
  %v376 = vpack.c.b16 %v372, %v371
  %v377 = vpack.c.b16 %v374, %v373
  %v378 = vpack.c.b16 %v375, %v375
  %v382 = vsel %vm254, %v378, 0
  %384 = vmatprep.subr.bf16.mxu0 0
  %385 = vmatpush1.bf16.msra.mxu0 %v376
  %386 = vmatprep.subr.bf16.mxu0 0
  %387 = vmatpush1.bf16.msra.mxu0 %v377
  %388 = vmatprep.subr.bf16.mxu0 0
  %389 = vmatpush1.bf16.msra.mxu0 %v382
  %390 = vmatprep.subr.bf16.mxu0 0
  %391 = vmatpush1.bf16.msra.mxu0 0
  %392 = vmatprep.subr.bf16.mxu0 0
  %393 = vmatpush1.bf16.msra.mxu0 0
  %394 = vmatprep.subr.bf16.mxu0 0
  %395 = vmatpush1.bf16.msra.mxu0 0
  %396 = vmatprep.subr.bf16.mxu0 0
  %397 = vmatpush1.bf16.msra.mxu0 0
  %398 = vmatprep.subr.bf16.mxu0 0
  %399 = vmatpush1.bf16.msra.mxu0 0
  %400 = vmatprep.subr.bf16.mxu0 0
  %401 = vmatpush1.bf16.msra.mxu0 0
  %402 = vmatprep.subr.bf16.mxu0 0
  %403 = vmatpush1.bf16.msra.mxu0 0
  %404 = vmatprep.subr.bf16.mxu0 0
  %405 = vmatpush1.bf16.msra.mxu0 0
  %406 = vmatprep.subr.bf16.mxu0 0
  %407 = vmatpush1.bf16.msra.mxu0 0
  %408 = vmatprep.subr.bf16.mxu0 0
  %409 = vmatpush1.bf16.msra.mxu0 0
  %410 = vmatprep.subr.bf16.mxu0 0
  %411 = vmatpush1.bf16.msra.mxu0 0
  %412 = vmatprep.subr.bf16.mxu0 0
  %413 = vmatpush1.bf16.msra.mxu0 0
  %414 = vmatprep.subr.bf16.mxu0 0
  %415 = vmatpush1.bf16.msra.mxu0 0
  %416 = vmatprep.mubr.bf16.mxu0 0
  %417 = vmatmul.mubr.bf16.gmra.mrb[0].mxu0 %v252
  %v418 = vpop.f32.mrb[0].mxu0
  %v419 = vadd.f32 %v365, %v418
  %v420 = vpop.f32.mrb[0].mxu0
  %v421 = vpop.f32.mrb[0].mxu0
  %v422 = vadd.f32 %v365, %v421
  %v423 = vpop.f32.mrb[0].mxu0
  %424 = vdwg.mxu0
  %v425 = vpack.c.bf16 %v293, %v293
  %v426 = vpack.c.bf16 %v296, %v296
  %v427 = vpack.c.bf16 %v356, %v356
  %v428 = vpack.c.bf16 %v359, %v359
  %v429 = vpack.c.bf16 %v419, %v419
  %v430 = vpack.c.bf16 %v422, %v422
  %v431 = vmul.bf16 %v427, %v149
  %v432 = vmul.bf16 %v427, %v156
  %v433 = vmul.bf16 %v427, %v163
  %v434 = vmul.bf16 %v427, %v170
  %v435 = vmul.bf16 %v427, %v177
  %v436 = vmul.bf16 %v427, %v184
  %v437 = vmul.bf16 %v427, %v191
  %v438 = vmul.bf16 %v427, %v198
  %v439 = vmul.bf16 %v427, %v205
  %v440 = vmul.bf16 %v428, %v149
  %v441 = vmul.bf16 %v428, %v156
  %v442 = vmul.bf16 %v428, %v163
  %v443 = vmul.bf16 %v428, %v170
  %v444 = vmul.bf16 %v428, %v177
  %v445 = vmul.bf16 %v428, %v184
  %v446 = vmul.bf16 %v428, %v191
  %v447 = vmul.bf16 %v428, %v198
  %v448 = vmul.bf16 %v428, %v205
  %v449 = vmul.bf16 %v429, %v149
  %v450 = vmul.bf16 %v429, %v156
  %v451 = vmul.bf16 %v429, %v163
  %v452 = vmul.bf16 %v429, %v170
  %v453 = vmul.bf16 %v429, %v177
  %v454 = vmul.bf16 %v429, %v184
  %v455 = vmul.bf16 %v429, %v191
  %v456 = vmul.bf16 %v429, %v198
  %v457 = vmul.bf16 %v429, %v205
  %v458 = vmul.bf16 %v430, %v149
  %v459 = vmul.bf16 %v430, %v156
  %v460 = vmul.bf16 %v430, %v163
  %v461 = vmul.bf16 %v430, %v170
  %v462 = vmul.bf16 %v430, %v177
  %v463 = vmul.bf16 %v430, %v184
  %v464 = vmul.bf16 %v430, %v191
  %v465 = vmul.bf16 %v430, %v198
  %v466 = vmul.bf16 %v430, %v205
  %v476 = vunpack.c.l.b16 %v431
  %v477 = vunpack.c.l.b16 %v432
  %v478 = vunpack.c.l.b16 %v433
  %v479 = vunpack.c.l.b16 %v434
  %v480 = vunpack.c.l.b16 %v435
  %v481 = vunpack.c.l.b16 %v436
  %v482 = vunpack.c.l.b16 %v437
  %v483 = vunpack.c.l.b16 %v438
  %v484 = vunpack.c.l.b16 %v439
  %v485 = vpack.c.b16 %v477, %v476
  %v486 = vpack.c.b16 %v479, %v478
  %v487 = vpack.c.b16 %v481, %v480
  %v488 = vpack.c.b16 %v483, %v482
  %v489 = vpack.c.b16 %v484, %v484
  %v491 = vsel %vm250, %v425, 0
  %v494 = vsel %vm250, %v485, 0
  %v497 = vsel %vm250, %v486, 0
  %v500 = vsel %vm250, %v487, 0
  %v503 = vsel %vm250, %v488, 0
  %v506 = vsel %vm250, %v489, 0
  %508 = vmatprep.subr.bf16.mxu0 0
  %509 = vmatpush1.bf16.xpose.msra.mxu0 %v494
  %510 = vmatprep.subr.bf16.mxu0 0
  %511 = vmatpush1.bf16.xpose.msra.mxu0 %v497
  %512 = vmatprep.subr.bf16.mxu0 0
  %513 = vmatpush1.bf16.xpose.msra.mxu0 %v500
  %514 = vmatprep.subr.bf16.mxu0 0
  %515 = vmatpush1.bf16.xpose.msra.mxu0 %v503
  %516 = vmatprep.subr.bf16.mxu0 0
  %517 = vmatpush1.bf16.xpose.msra.mxu0 %v506
  %518 = vmatprep.subr.bf16.mxu0 0
  %519 = vmatpush1.bf16.xpose.msra.mxu0 0
  %520 = vmatprep.subr.bf16.mxu0 0
  %521 = vmatpush1.bf16.xpose.msra.mxu0 0
  %522 = vmatprep.subr.bf16.mxu0 0
  %523 = vmatpush1.bf16.xpose.msra.mxu0 0
  %524 = vmatprep.subr.bf16.mxu0 0
  %525 = vmatpush1.bf16.xpose.msra.mxu0 0
  %526 = vmatprep.subr.bf16.mxu0 0
  %527 = vmatpush1.bf16.xpose.msra.mxu0 0
  %528 = vmatprep.subr.bf16.mxu0 0
  %529 = vmatpush1.bf16.xpose.msra.mxu0 0
  %530 = vmatprep.subr.bf16.mxu0 0
  %531 = vmatpush1.bf16.xpose.msra.mxu0 0
  %532 = vmatprep.subr.bf16.mxu0 0
  %533 = vmatpush1.bf16.xpose.msra.mxu0 0
  %534 = vmatprep.subr.bf16.mxu0 0
  %535 = vmatpush1.bf16.xpose.msra.mxu0 0
  %536 = vmatprep.subr.bf16.mxu0 0
  %537 = vmatpush1.bf16.xpose.msra.mxu0 0
  %538 = vmatprep.subr.bf16.mxu0 0
  %539 = vmatpush1.bf16.xpose.msra.mxu0 0
  %540 = vmatprep.mubr.bf16.mxu0 0
  %541 = vmatmul.mubr.bf16.gmra.mrb[0].mxu0 %v491
  %v542 = vpop.f32.mrb[0].mxu0
  %v543 = vadd.f32 0.0, %v542
  %v544 = vpop.f32.mrb[0].mxu0
  %v545 = vpop.f32.mrb[0].mxu0
  %v546 = vpop.f32.mrb[0].mxu0
  %547 = vdwg.mxu0
  %v557 = vunpack.c.l.b16 %v440
  %v558 = vunpack.c.l.b16 %v441
  %v559 = vunpack.c.l.b16 %v442
  %v560 = vunpack.c.l.b16 %v443
  %v561 = vunpack.c.l.b16 %v444
  %v562 = vunpack.c.l.b16 %v445
  %v563 = vunpack.c.l.b16 %v446
  %v564 = vunpack.c.l.b16 %v447
  %v565 = vunpack.c.l.b16 %v448
  %v566 = vpack.c.b16 %v558, %v557
  %v567 = vpack.c.b16 %v560, %v559
  %v568 = vpack.c.b16 %v562, %v561
  %v569 = vpack.c.b16 %v564, %v563
  %v570 = vpack.c.b16 %v565, %v565
  %v572 = vsel %vm250, %v426, 0
  %v575 = vsel %vm250, %v566, 0
  %v578 = vsel %vm250, %v567, 0
  %v581 = vsel %vm250, %v568, 0
  %v584 = vsel %vm250, %v569, 0
  %v587 = vsel %vm250, %v570, 0
  %589 = vmatprep.subr.bf16.mxu0 0
  %590 = vmatpush1.bf16.xpose.msra.mxu0 %v575
  %591 = vmatprep.subr.bf16.mxu0 0
  %592 = vmatpush1.bf16.xpose.msra.mxu0 %v578
  %593 = vmatprep.subr.bf16.mxu0 0
  %594 = vmatpush1.bf16.xpose.msra.mxu0 %v581
  %595 = vmatprep.subr.bf16.mxu0 0
  %596 = vmatpush1.bf16.xpose.msra.mxu0 %v584
  %597 = vmatprep.subr.bf16.mxu0 0
  %598 = vmatpush1.bf16.xpose.msra.mxu0 %v587
  %599 = vmatprep.subr.bf16.mxu0 0
  %600 = vmatpush1.bf16.xpose.msra.mxu0 0
  %601 = vmatprep.subr.bf16.mxu0 0
  %602 = vmatpush1.bf16.xpose.msra.mxu0 0
  %603 = vmatprep.subr.bf16.mxu0 0
  %604 = vmatpush1.bf16.xpose.msra.mxu0 0
  %605 = vmatprep.subr.bf16.mxu0 0
  %606 = vmatpush1.bf16.xpose.msra.mxu0 0
  %607 = vmatprep.subr.bf16.mxu0 0
  %608 = vmatpush1.bf16.xpose.msra.mxu0 0
  %609 = vmatprep.subr.bf16.mxu0 0
  %610 = vmatpush1.bf16.xpose.msra.mxu0 0
  %611 = vmatprep.subr.bf16.mxu0 0
  %612 = vmatpush1.bf16.xpose.msra.mxu0 0
  %613 = vmatprep.subr.bf16.mxu0 0
  %614 = vmatpush1.bf16.xpose.msra.mxu0 0
  %615 = vmatprep.subr.bf16.mxu0 0
  %616 = vmatpush1.bf16.xpose.msra.mxu0 0
  %617 = vmatprep.subr.bf16.mxu0 0
  %618 = vmatpush1.bf16.xpose.msra.mxu0 0
  %619 = vmatprep.subr.bf16.mxu0 0
  %620 = vmatpush1.bf16.xpose.msra.mxu0 0
  %621 = vmatprep.mubr.bf16.mxu0 0
  %622 = vmatmul.mubr.bf16.gmra.mrb[0].mxu0 %v572
  %v623 = vpop.f32.mrb[0].mxu0
  %v624 = vadd.f32 0.0, %v623
  %v625 = vpop.f32.mrb[0].mxu0
  %v626 = vpop.f32.mrb[0].mxu0
  %v627 = vpop.f32.mrb[0].mxu0
  %628 = vdwg.mxu0
  %vm629 = vcmask 588800
  %v630 = vsel %vm629, %v543, -inf
  %631 = vmax.xlane.f32.xlu0 %v630
  %v632 = vpop.xlane.xlu0 %631
  %v633 = vsel %vm629, %v624, -inf
  %634 = vmax.xlane.f32.xlu0 %v633
  %v635 = vpop.xlane.xlu0 %634
  %v636 = vsub.f32 %v543, %v632
  %v637 = vsub.f32 %v624, %v635
  %v638 = vmul.f32 %v636, 1.442695
  %v639 = vpow.pop %v638
  %v640 = vmul.f32 %v637, 1.442695
  %v641 = vpow.pop %v640
  %v642 = vpack.c.bf16 %v639, %v639
  %v643 = vpack.c.bf16 %v641, %v641
  %v646 = vunpack.c.l.b16 %v642
  %v647 = vunpack.c.l.b16 %v643
  %v648 = vpack.c.b16 %v647, %v646
  %v658 = vunpack.c.l.b16 %v40
  %v659 = vunpack.c.l.b16 %v41
  %v660 = vunpack.c.l.b16 %v42
  %v661 = vunpack.c.l.b16 %v43
  %v662 = vunpack.c.l.b16 %v44
  %v663 = vunpack.c.l.b16 %v45
  %v664 = vunpack.c.l.b16 %v46
  %v665 = vunpack.c.l.b16 %v47
  %v666 = vunpack.c.l.b16 %v48
  %v667 = vpack.c.b16 %v659, %v658
  %v668 = vpack.c.b16 %v661, %v660
  %v669 = vpack.c.b16 %v663, %v662
  %v670 = vpack.c.b16 %v665, %v664
  %v671 = vpack.c.b16 %v666, %v666
  %v677 = vsel %vm629, %v648, 0
  %vm679 = vcmask 1043456
  %v681 = vsel %vm679, %v671, 0
  %683 = vmatprep.subr.bf16.mxu0 0
  %684 = vmatpush1.bf16.msra.mxu0 %v667
  %685 = vmatprep.subr.bf16.mxu0 0
  %686 = vmatpush1.bf16.msra.mxu0 %v668
  %687 = vmatprep.subr.bf16.mxu0 0
  %688 = vmatpush1.bf16.msra.mxu0 %v669
  %689 = vmatprep.subr.bf16.mxu0 0
  %690 = vmatpush1.bf16.msra.mxu0 %v670
  %691 = vmatprep.subr.bf16.mxu0 0
  %692 = vmatpush1.bf16.msra.mxu0 %v681
  %693 = vmatprep.subr.bf16.mxu0 0
  %694 = vmatpush1.bf16.msra.mxu0 0
  %695 = vmatprep.subr.bf16.mxu0 0
  %696 = vmatpush1.bf16.msra.mxu0 0
  %697 = vmatprep.subr.bf16.mxu0 0
  %698 = vmatpush1.bf16.msra.mxu0 0
  %699 = vmatprep.subr.bf16.mxu0 0
  %700 = vmatpush1.bf16.msra.mxu0 0
  %701 = vmatprep.subr.bf16.mxu0 0
  %702 = vmatpush1.bf16.msra.mxu0 0
  %703 = vmatprep.subr.bf16.mxu0 0
  %704 = vmatpush1.bf16.msra.mxu0 0
  %705 = vmatprep.subr.bf16.mxu0 0
  %706 = vmatpush1.bf16.msra.mxu0 0
  %707 = vmatprep.subr.bf16.mxu0 0
  %708 = vmatpush1.bf16.msra.mxu0 0
  %709 = vmatprep.subr.bf16.mxu0 0
  %710 = vmatpush1.bf16.msra.mxu0 0
  %711 = vmatprep.subr.bf16.mxu0 0
  %712 = vmatpush1.bf16.msra.mxu0 0
  %713 = vmatprep.subr.bf16.mxu0 0
  %714 = vmatpush1.bf16.msra.mxu0 0
  %715 = vmatprep.mubr.bf16.mxu0 0
  %716 = vmatmul.mubr.bf16.gmra.mrb[0].mxu0 %v677
  %v717 = vpop.f32.mrb[0].mxu0
  %v718 = vadd.f32 0.0, %v717
  %v719 = vpop.f32.mrb[0].mxu0
  %v720 = vpop.f32.mrb[0].mxu0
  %v721 = vadd.f32 0.0, %v720
  %v722 = vpop.f32.mrb[0].mxu0
  %723 = vdwg.mxu0
  %v724 = vrcp.pop %v718
  %v725 = vrcp.pop %v721
  %v726 = vpack.c.bf16 %v725, %v724
  %v736 = vunpack.c.l.b16 %v449
  %v737 = vunpack.c.l.b16 %v450
  %v738 = vunpack.c.l.b16 %v451
  %v739 = vunpack.c.l.b16 %v452
  %v740 = vunpack.c.l.b16 %v453
  %v741 = vunpack.c.l.b16 %v454
  %v742 = vunpack.c.l.b16 %v455
  %v743 = vunpack.c.l.b16 %v456
  %v744 = vunpack.c.l.b16 %v457
  %v745 = vpack.c.b16 %v737, %v736
  %v746 = vpack.c.b16 %v739, %v738
  %v747 = vpack.c.b16 %v741, %v740
  %v748 = vpack.c.b16 %v743, %v742
  %v749 = vpack.c.b16 %v744, %v744
  %v755 = vsel %vm629, %v642, 0
  %v758 = vsel %vm679, %v749, 0
  %760 = vmatprep.subr.bf16.mxu0 0
  %761 = vmatpush1.bf16.msra.mxu0 %v745
  %762 = vmatprep.subr.bf16.mxu0 0
  %763 = vmatpush1.bf16.msra.mxu0 %v746
  %764 = vmatprep.subr.bf16.mxu0 0
  %765 = vmatpush1.bf16.msra.mxu0 %v747
  %766 = vmatprep.subr.bf16.mxu0 0
  %767 = vmatpush1.bf16.msra.mxu0 %v748
  %768 = vmatprep.subr.bf16.mxu0 0
  %769 = vmatpush1.bf16.msra.mxu0 %v758
  %770 = vmatprep.subr.bf16.mxu0 0
  %771 = vmatpush1.bf16.msra.mxu0 0
  %772 = vmatprep.subr.bf16.mxu0 0
  %773 = vmatpush1.bf16.msra.mxu0 0
  %774 = vmatprep.subr.bf16.mxu0 0
  %775 = vmatpush1.bf16.msra.mxu0 0
  %776 = vmatprep.subr.bf16.mxu0 0
  %777 = vmatpush1.bf16.msra.mxu0 0
  %778 = vmatprep.subr.bf16.mxu0 0
  %779 = vmatpush1.bf16.msra.mxu0 0
  %780 = vmatprep.subr.bf16.mxu0 0
  %781 = vmatpush1.bf16.msra.mxu0 0
  %782 = vmatprep.subr.bf16.mxu0 0
  %783 = vmatpush1.bf16.msra.mxu0 0
  %784 = vmatprep.subr.bf16.mxu0 0
  %785 = vmatpush1.bf16.msra.mxu0 0
  %786 = vmatprep.subr.bf16.mxu0 0
  %787 = vmatpush1.bf16.msra.mxu0 0
  %788 = vmatprep.subr.bf16.mxu0 0
  %789 = vmatpush1.bf16.msra.mxu0 0
  %790 = vmatprep.subr.bf16.mxu0 0
  %791 = vmatpush1.bf16.msra.mxu0 0
  %792 = vmatprep.mubr.bf16.mxu0 0
  %793 = vmatmul.mubr.bf16.gmra.mrb[0].mxu0 %v755
  %v794 = vpop.f32.mrb[0].mxu0
  %v795 = vadd.f32 0.0, %v794
  %v796 = vpop.f32.mrb[0].mxu0
  %v797 = vpop.f32.mrb[0].mxu0
  %v798 = vpop.f32.mrb[0].mxu0
  %799 = vdwg.mxu0
  %v809 = vunpack.c.l.b16 %v458
  %v810 = vunpack.c.l.b16 %v459
  %v811 = vunpack.c.l.b16 %v460
  %v812 = vunpack.c.l.b16 %v461
  %v813 = vunpack.c.l.b16 %v462
  %v814 = vunpack.c.l.b16 %v463
  %v815 = vunpack.c.l.b16 %v464
  %v816 = vunpack.c.l.b16 %v465
  %v817 = vunpack.c.l.b16 %v466
  %v818 = vpack.c.b16 %v810, %v809
  %v819 = vpack.c.b16 %v812, %v811
  %v820 = vpack.c.b16 %v814, %v813
  %v821 = vpack.c.b16 %v816, %v815
  %v822 = vpack.c.b16 %v817, %v817
  %v828 = vsel %vm629, %v643, 0
  %v831 = vsel %vm679, %v822, 0
  %833 = vmatprep.subr.bf16.mxu0 0
  %834 = vmatpush1.bf16.msra.mxu0 %v818
  %835 = vmatprep.subr.bf16.mxu0 0
  %836 = vmatpush1.bf16.msra.mxu0 %v819
  %837 = vmatprep.subr.bf16.mxu0 0
  %838 = vmatpush1.bf16.msra.mxu0 %v820
  %839 = vmatprep.subr.bf16.mxu0 0
  %840 = vmatpush1.bf16.msra.mxu0 %v821
  %841 = vmatprep.subr.bf16.mxu0 0
  %842 = vmatpush1.bf16.msra.mxu0 %v831
  %843 = vmatprep.subr.bf16.mxu0 0
  %844 = vmatpush1.bf16.msra.mxu0 0
  %845 = vmatprep.subr.bf16.mxu0 0
  %846 = vmatpush1.bf16.msra.mxu0 0
  %847 = vmatprep.subr.bf16.mxu0 0
  %848 = vmatpush1.bf16.msra.mxu0 0
  %849 = vmatprep.subr.bf16.mxu0 0
  %850 = vmatpush1.bf16.msra.mxu0 0
  %851 = vmatprep.subr.bf16.mxu0 0
  %852 = vmatpush1.bf16.msra.mxu0 0
  %853 = vmatprep.subr.bf16.mxu0 0
  %854 = vmatpush1.bf16.msra.mxu0 0
  %855 = vmatprep.subr.bf16.mxu0 0
  %856 = vmatpush1.bf16.msra.mxu0 0
  %857 = vmatprep.subr.bf16.mxu0 0
  %858 = vmatpush1.bf16.msra.mxu0 0
  %859 = vmatprep.subr.bf16.mxu0 0
  %860 = vmatpush1.bf16.msra.mxu0 0
  %861 = vmatprep.subr.bf16.mxu0 0
  %862 = vmatpush1.bf16.msra.mxu0 0
  %863 = vmatprep.subr.bf16.mxu0 0
  %864 = vmatpush1.bf16.msra.mxu0 0
  %865 = vmatprep.mubr.bf16.mxu0 0
  %866 = vmatmul.mubr.bf16.gmra.mrb[0].mxu0 %v828
  %v867 = vpop.f32.mrb[0].mxu0
  %v868 = vadd.f32 0.0, %v867
  %v869 = vpop.f32.mrb[0].mxu0
  %v870 = vpop.f32.mrb[0].mxu0
  %v871 = vpop.f32.mrb[0].mxu0
  %872 = vdwg.mxu0
  %v873 = vunpack.c.l.b16 %v38
  %v874 = vunpack.c.l.b16 %v39
  %v875 = vpack.c.b16 %v874, %v873
  %vm876 = vcmask 72704
  %v878 = vsel %vm876, %v726, 0
  %vm880 = vcmask 1044480
  %v881 = vsel %vm679, 4294967295, 65535
  %v882 = vsel %vm880, %v881, 0
  %v884 = vand.u32 %v875, %v882
  %886 = vmatprep.subr.bf16.mxu0 0
  %887 = vmatpush1.bf16.msra.mxu0 %v884
  %888 = vmatprep.subr.bf16.mxu0 0
  %889 = vmatpush1.bf16.msra.mxu0 0
  %890 = vmatprep.subr.bf16.mxu0 0
  %891 = vmatpush1.bf16.msra.mxu0 0
  %892 = vmatprep.subr.bf16.mxu0 0
  %893 = vmatpush1.bf16.msra.mxu0 0
  %894 = vmatprep.subr.bf16.mxu0 0
  %895 = vmatpush1.bf16.msra.mxu0 0
  %896 = vmatprep.subr.bf16.mxu0 0
  %897 = vmatpush1.bf16.msra.mxu0 0
  %898 = vmatprep.subr.bf16.mxu0 0
  %899 = vmatpush1.bf16.msra.mxu0 0
  %900 = vmatprep.subr.bf16.mxu0 0
  %901 = vmatpush1.bf16.msra.mxu0 0
  %902 = vmatprep.subr.bf16.mxu0 0
  %903 = vmatpush1.bf16.msra.mxu0 0
  %904 = vmatprep.subr.bf16.mxu0 0
  %905 = vmatpush1.bf16.msra.mxu0 0
  %906 = vmatprep.subr.bf16.mxu0 0
  %907 = vmatpush1.bf16.msra.mxu0 0
  %908 = vmatprep.subr.bf16.mxu0 0
  %909 = vmatpush1.bf16.msra.mxu0 0
  %910 = vmatprep.subr.bf16.mxu0 0
  %911 = vmatpush1.bf16.msra.mxu0 0
  %912 = vmatprep.subr.bf16.mxu0 0
  %913 = vmatpush1.bf16.msra.mxu0 0
  %914 = vmatprep.subr.bf16.mxu0 0
  %915 = vmatpush1.bf16.msra.mxu0 0
  %916 = vmatprep.subr.bf16.mxu0 0
  %917 = vmatpush1.bf16.msra.mxu0 0
  %918 = vmatprep.mubr.bf16.mxu0 0
  %919 = vmatmul.mubr.bf16.gmra.mrb[0].mxu0 %v878
  %v920 = vpop.f32.mrb[0].mxu0
  %v921 = vadd.f32 0.0, %v920
  %v922 = vpop.f32.mrb[0].mxu0
  %v923 = vpop.f32.mrb[0].mxu0
  %v924 = vadd.f32 0.0, %v923
  %v925 = vpop.f32.mrb[0].mxu0
  %926 = vdwg.mxu0
  %v927 = vmul.f32 %v795, %v921
  %v928 = vmul.f32 %v868, %v924
  %v929 = vpack.c.bf16 %v928, %v927
  %v930 = vlaneseq
  %v931 = vshrl.u32 %v930, 7
  %v932 = vsub.s32 3, %v931
  %v933 = vrot.slane %v228, %v932
  %v939 = vunpack.c.l.b16 %v223
  %v940 = vunpack.c.l.b16 %v224
  %v941 = vunpack.c.l.b16 %v225
  %v942 = vunpack.c.l.b16 %v226
  %v943 = vunpack.c.l.b16 %v227
  %v944 = vpack.c.b16 %v940, %v939
  %v945 = vpack.c.b16 %v942, %v941
  %v946 = vpack.c.b16 %v943, %v943
  %v950 = vsel %vm250, %v929, 0
  %v953 = vsel %vm254, %v946, 0
  %955 = vmatprep.subr.bf16.mxu0 0
  %956 = vmatpush1.bf16.msra.mxu0 %v944
  %957 = vmatprep.subr.bf16.mxu0 0
  %958 = vmatpush1.bf16.msra.mxu0 %v945
  %959 = vmatprep.subr.bf16.mxu0 0
  %960 = vmatpush1.bf16.msra.mxu0 %v953
  %961 = vmatprep.subr.bf16.mxu0 0
  %962 = vmatpush1.bf16.msra.mxu0 0
  %963 = vmatprep.subr.bf16.mxu0 0
  %964 = vmatpush1.bf16.msra.mxu0 0
  %965 = vmatprep.subr.bf16.mxu0 0
  %966 = vmatpush1.bf16.msra.mxu0 0
  %967 = vmatprep.subr.bf16.mxu0 0
  %968 = vmatpush1.bf16.msra.mxu0 0
  %969 = vmatprep.subr.bf16.mxu0 0
  %970 = vmatpush1.bf16.msra.mxu0 0
  %971 = vmatprep.subr.bf16.mxu0 0
  %972 = vmatpush1.bf16.msra.mxu0 0
  %973 = vmatprep.subr.bf16.mxu0 0
  %974 = vmatpush1.bf16.msra.mxu0 0
  %975 = vmatprep.subr.bf16.mxu0 0
  %976 = vmatpush1.bf16.msra.mxu0 0
  %977 = vmatprep.subr.bf16.mxu0 0
  %978 = vmatpush1.bf16.msra.mxu0 0
  %979 = vmatprep.subr.bf16.mxu0 0
  %980 = vmatpush1.bf16.msra.mxu0 0
  %981 = vmatprep.subr.bf16.mxu0 0
  %982 = vmatpush1.bf16.msra.mxu0 0
  %983 = vmatprep.subr.bf16.mxu0 0
  %984 = vmatpush1.bf16.msra.mxu0 0
  %985 = vmatprep.subr.bf16.mxu0 0
  %986 = vmatpush1.bf16.msra.mxu0 0
  %987 = vmatprep.mubr.bf16.mxu0 0
  %988 = vmatmul.mubr.bf16.gmra.mrb[0].mxu0 %v950
  %v989 = vpop.f32.mrb[0].mxu0
  %v990 = vadd.f32 %v933, %v989
  %v991 = vpop.f32.mrb[0].mxu0
  %v992 = vpop.f32.mrb[0].mxu0
  %v993 = vadd.f32 %v933, %v992
  %v994 = vpop.f32.mrb[0].mxu0
  %995 = vdwg.mxu0
  %v996 = vadd.f32 %v206, %v990
  %v997 = vadd.f32 %v207, %v993
  %v998 = vsel %vm250, %v996, 0.0
  %999 = vadd.xlane.f32.xlu0 %v998
  %v1000 = vpop.xlane.xlu0 %999
  %v1001 = vsel %vm250, %v997, 0.0
  %1002 = vadd.xlane.f32.xlu0 %v1001
  %v1003 = vpop.xlane.xlu0 %1002
  %v1004 = vrcp.pop 36.0
  %v1005 = vmul.f32 %v1000, %v1004
  %v1006 = vmul.f32 %v1003, %v1004
  %v1007 = vsub.f32 %v996, %v1005
  %v1008 = vsub.f32 %v997, %v1006
  %v1009 = vmul.f32 %v1007, %v1007
  %v1010 = vmul.f32 %v1008, %v1008
  %v1011 = vsel %vm250, %v1009, 0.0
  %1012 = vadd.xlane.f32.xlu0 %v1011
  %v1013 = vpop.xlane.xlu0 %1012
  %v1014 = vsel %vm250, %v1010, 0.0
  %1015 = vadd.xlane.f32.xlu0 %v1014
  %v1016 = vpop.xlane.xlu0 %1015
  %v1017 = vmul.f32 %v1013, %v1004
  %v1018 = vmul.f32 %v1016, %v1004
  %v1019 = vadd.f32 %v1017, 1e-05
  %v1020 = vadd.f32 %v1018, 1e-05
  %v1021 = vrsqrt.pop %v1019
  %v1022 = vrsqrt.pop %v1020
  %v1023 = vmul.f32 %v1007, %v1021
  %v1024 = vmul.f32 %v1008, %v1022
  %v1025 = vlaneseq
  %v1026 = vshrl.u32 %v1025, 7
  %v1027 = vsub.s32 4, %v1026
  %v1028 = vrot.slane %v228, %v1027
  %v1029 = vmul.f32 %v1023, %v1028
  %v1030 = vmul.f32 %v1024, %v1028
  %v1031 = vlaneseq
  %v1032 = vshrl.u32 %v1031, 7
  %v1033 = vsub.s32 5, %v1032
  %v1034 = vrot.slane %v228, %v1033
  %v1035 = vadd.f32 %v1029, %v1034
  %v1036 = vadd.f32 %v1030, %v1034
  %v1037 = vpack.c.bf16 %v1036, %v1035
  %v1038 = vld [vmem:[%s3] sm:$0xf]
  %v1039 = vld [vmem:[%s3 + $0x4] sm:$0xf]
  %v1040 = vld [vmem:[%s3 + $0x8] sm:$0xf]
  %v1041 = vld [vmem:[%s3 + $0xc] sm:$0xf]
  %v1042 = vld [vmem:[%s3 + $0x10] sm:$0x3]
  %v1043 = vld [vmem:[%s4] sm:$0x1]
  %v1045 = vlaneseq
  %v1046 = vshrl.u32 %v1045, 7
  %v1047 = vsub.s32 0, %v1046
  %v1048 = vrot.slane %v1043, %v1047
  %v1055 = vunpack.c.l.b16 %v1038
  %v1056 = vunpack.c.l.b16 %v1039
  %v1057 = vunpack.c.l.b16 %v1040
  %v1058 = vunpack.c.l.b16 %v1041
  %v1059 = vunpack.c.l.b16 %v1042
  %v1060 = vpack.c.b16 %v1056, %v1055
  %v1061 = vpack.c.b16 %v1058, %v1057
  %v1062 = vpack.c.b16 %v1059, %v1059
  %v1066 = vsel %vm250, %v1037, 0
  %v1069 = vsel %vm254, %v1062, 0
  %1071 = vmatprep.subr.bf16.mxu0 0
  %1072 = vmatpush1.bf16.msra.mxu0 %v1060
  %1073 = vmatprep.subr.bf16.mxu0 0
  %1074 = vmatpush1.bf16.msra.mxu0 %v1061
  %1075 = vmatprep.subr.bf16.mxu0 0
  %1076 = vmatpush1.bf16.msra.mxu0 %v1069
  %1077 = vmatprep.subr.bf16.mxu0 0
  %1078 = vmatpush1.bf16.msra.mxu0 0
  %1079 = vmatprep.subr.bf16.mxu0 0
  %1080 = vmatpush1.bf16.msra.mxu0 0
  %1081 = vmatprep.subr.bf16.mxu0 0
  %1082 = vmatpush1.bf16.msra.mxu0 0
  %1083 = vmatprep.subr.bf16.mxu0 0
  %1084 = vmatpush1.bf16.msra.mxu0 0
  %1085 = vmatprep.subr.bf16.mxu0 0
  %1086 = vmatpush1.bf16.msra.mxu0 0
  %1087 = vmatprep.subr.bf16.mxu0 0
  %1088 = vmatpush1.bf16.msra.mxu0 0
  %1089 = vmatprep.subr.bf16.mxu0 0
  %1090 = vmatpush1.bf16.msra.mxu0 0
  %1091 = vmatprep.subr.bf16.mxu0 0
  %1092 = vmatpush1.bf16.msra.mxu0 0
  %1093 = vmatprep.subr.bf16.mxu0 0
  %1094 = vmatpush1.bf16.msra.mxu0 0
  %1095 = vmatprep.subr.bf16.mxu0 0
  %1096 = vmatpush1.bf16.msra.mxu0 0
  %1097 = vmatprep.subr.bf16.mxu0 0
  %1098 = vmatpush1.bf16.msra.mxu0 0
  %1099 = vmatprep.subr.bf16.mxu0 0
  %1100 = vmatpush1.bf16.msra.mxu0 0
  %1101 = vmatprep.subr.bf16.mxu0 0
  %1102 = vmatpush1.bf16.msra.mxu0 0
  %1103 = vmatprep.mubr.bf16.mxu0 0
  %1104 = vmatmul.mubr.bf16.gmra.mrb[0].mxu0 %v1066
  %v1105 = vpop.f32.mrb[0].mxu0
  %v1106 = vadd.f32 %v1048, %v1105
  %v1107 = vpop.f32.mrb[0].mxu0
  %v1108 = vpop.f32.mrb[0].mxu0
  %v1109 = vadd.f32 %v1048, %v1108
  %v1110 = vpop.f32.mrb[0].mxu0
  %1111 = vdwg.mxu0
  %v1112 = vmax.f32 %v1106, 0.0
  %v1113 = vmax.f32 %v1109, 0.0
  %v1114 = vpack.c.bf16 %v1113, %v1112
  %v1115 = vld [vmem:[%s5] sm:$0xf]
  %v1116 = vld [vmem:[%s5 + $0x4] sm:$0xf]
  %v1117 = vld [vmem:[%s5 + $0x8] sm:$0xf]
  %v1118 = vld [vmem:[%s5 + $0xc] sm:$0xf]
  %v1119 = vld [vmem:[%s5 + $0x10] sm:$0xf]
  %v1120 = vld [vmem:[%s5 + $0x14] sm:$0xf]
  %v1121 = vld [vmem:[%s5 + $0x18] sm:$0xf]
  %v1122 = vld [vmem:[%s5 + $0x1c] sm:$0xf]
  %v1123 = vld [vmem:[%s5 + $0x20] sm:$0xf]
  %v1124 = vld [vmem:[%s5 + $0x24] sm:$0xf]
  %v1125 = vld [vmem:[%s5 + $0x28] sm:$0xf]
  %v1126 = vld [vmem:[%s5 + $0x2c] sm:$0xf]
  %v1127 = vld [vmem:[%s5 + $0x30] sm:$0xf]
  %v1128 = vld [vmem:[%s5 + $0x34] sm:$0xf]
  %v1129 = vld [vmem:[%s5 + $0x38] sm:$0xf]
  %v1130 = vld [vmem:[%s5 + $0x3c] sm:$0xf]
  %v1131 = vlaneseq
  %v1132 = vshrl.u32 %v1131, 7
  %v1133 = vsub.s32 6, %v1132
  %v1134 = vrot.slane %v228, %v1133
  %v1151 = vunpack.c.l.b16 %v1115
  %v1152 = vunpack.c.l.b16 %v1116
  %v1153 = vunpack.c.l.b16 %v1117
  %v1154 = vunpack.c.l.b16 %v1118
  %v1155 = vunpack.c.l.b16 %v1119
  %v1156 = vunpack.c.l.b16 %v1120
  %v1157 = vunpack.c.l.b16 %v1121
  %v1158 = vunpack.c.l.b16 %v1122
  %v1159 = vunpack.c.l.b16 %v1123
  %v1160 = vunpack.c.l.b16 %v1124
  %v1161 = vunpack.c.l.b16 %v1125
  %v1162 = vunpack.c.l.b16 %v1126
  %v1163 = vunpack.c.l.b16 %v1127
  %v1164 = vunpack.c.l.b16 %v1128
  %v1165 = vunpack.c.l.b16 %v1129
  %v1166 = vunpack.c.l.b16 %v1130
  %v1167 = vpack.c.b16 %v1152, %v1151
  %v1168 = vpack.c.b16 %v1154, %v1153
  %v1169 = vpack.c.b16 %v1156, %v1155
  %v1170 = vpack.c.b16 %v1158, %v1157
  %v1171 = vpack.c.b16 %v1160, %v1159
  %v1172 = vpack.c.b16 %v1162, %v1161
  %v1173 = vpack.c.b16 %v1164, %v1163
  %v1174 = vpack.c.b16 %v1166, %v1165
  %1183 = vmatprep.subr.bf16.mxu0 0
  %1184 = vmatpush1.bf16.msra.mxu0 %v1167
  %1185 = vmatprep.subr.bf16.mxu0 0
  %1186 = vmatpush1.bf16.msra.mxu0 %v1168
  %1187 = vmatprep.subr.bf16.mxu0 0
  %1188 = vmatpush1.bf16.msra.mxu0 %v1169
  %1189 = vmatprep.subr.bf16.mxu0 0
  %1190 = vmatpush1.bf16.msra.mxu0 %v1170
  %1191 = vmatprep.subr.bf16.mxu0 0
  %1192 = vmatpush1.bf16.msra.mxu0 %v1171
  %1193 = vmatprep.subr.bf16.mxu0 0
  %1194 = vmatpush1.bf16.msra.mxu0 %v1172
  %1195 = vmatprep.subr.bf16.mxu0 0
  %1196 = vmatpush1.bf16.msra.mxu0 %v1173
  %1197 = vmatprep.subr.bf16.mxu0 0
  %1198 = vmatpush1.bf16.msra.mxu0 %v1174
  %1199 = vmatprep.subr.bf16.mxu0 0
  %1200 = vmatpush1.bf16.msra.mxu0 0
  %1201 = vmatprep.subr.bf16.mxu0 0
  %1202 = vmatpush1.bf16.msra.mxu0 0
  %1203 = vmatprep.subr.bf16.mxu0 0
  %1204 = vmatpush1.bf16.msra.mxu0 0
  %1205 = vmatprep.subr.bf16.mxu0 0
  %1206 = vmatpush1.bf16.msra.mxu0 0
  %1207 = vmatprep.subr.bf16.mxu0 0
  %1208 = vmatpush1.bf16.msra.mxu0 0
  %1209 = vmatprep.subr.bf16.mxu0 0
  %1210 = vmatpush1.bf16.msra.mxu0 0
  %1211 = vmatprep.subr.bf16.mxu0 0
  %1212 = vmatpush1.bf16.msra.mxu0 0
  %1213 = vmatprep.subr.bf16.mxu0 0
  %1214 = vmatpush1.bf16.msra.mxu0 0
  %1215 = vmatprep.mubr.bf16.mxu0 0
  %1216 = vmatmul.mubr.bf16.gmra.mrb[0].mxu0 %v1114
  %v1217 = vpop.f32.mrb[0].mxu0
  %v1218 = vadd.f32 %v1134, %v1217
  %v1219 = vpop.f32.mrb[0].mxu0
  %v1220 = vpop.f32.mrb[0].mxu0
  %v1221 = vadd.f32 %v1134, %v1220
  %v1222 = vpop.f32.mrb[0].mxu0
  %1223 = vdwg.mxu0
  %v1224 = vadd.f32 %v1035, %v1218
  %v1225 = vadd.f32 %v1036, %v1221
  %v1226 = vsel %vm250, %v1224, 0.0
  %1227 = vadd.xlane.f32.xlu0 %v1226
  %v1228 = vpop.xlane.xlu0 %1227
  %v1229 = vsel %vm250, %v1225, 0.0
  %1230 = vadd.xlane.f32.xlu0 %v1229
  %v1231 = vpop.xlane.xlu0 %1230
  %v1232 = vmul.f32 %v1228, %v1004
  %v1233 = vmul.f32 %v1231, %v1004
  %v1234 = vsub.f32 %v1224, %v1232
  %v1235 = vsub.f32 %v1225, %v1233
  %v1236 = vmul.f32 %v1234, %v1234
  %v1237 = vmul.f32 %v1235, %v1235
  %v1238 = vsel %vm250, %v1236, 0.0
  %1239 = vadd.xlane.f32.xlu0 %v1238
  %v1240 = vpop.xlane.xlu0 %1239
  %v1241 = vsel %vm250, %v1237, 0.0
  %1242 = vadd.xlane.f32.xlu0 %v1241
  %v1243 = vpop.xlane.xlu0 %1242
  %v1244 = vmul.f32 %v1240, %v1004
  %v1245 = vmul.f32 %v1243, %v1004
  %v1246 = vadd.f32 %v1244, 1e-05
  %v1247 = vadd.f32 %v1245, 1e-05
  %v1248 = vrsqrt.pop %v1246
  %v1249 = vrsqrt.pop %v1247
  %v1250 = vmul.f32 %v1234, %v1248
  %v1251 = vmul.f32 %v1235, %v1249
  %v1252 = vlaneseq
  %v1253 = vshrl.u32 %v1252, 7
  %v1254 = vsub.s32 7, %v1253
  %v1255 = vrot.slane %v228, %v1254
  %v1256 = vmul.f32 %v1250, %v1255
  %v1257 = vmul.f32 %v1251, %v1255
  %v1258 = vlaneseq
  %v1259 = vshrl.u32 %v1258, 7
  %v1260 = vsub.s32 0, %v1259
  %v1261 = vrot.slane %v229, %v1260
  %v1262 = vadd.f32 %v1256, %v1261
  %v1263 = vadd.f32 %v1257, %v1261
  %s1264 = scalar_lea.vmem %s1, 80
  %v1265 = vld [vmem:[%s1264] sm:$0xf]
  %v1266 = vld [vmem:[%s1264 + $0x4] sm:$0xf]
  %v1267 = vld [vmem:[%s1264 + $0x8] sm:$0xf]
  %v1268 = vld [vmem:[%s1264 + $0xc] sm:$0xf]
  %v1269 = vld [vmem:[%s1264 + $0x10] sm:$0x3]
  %v1270 = vld [vmem:[%s1264 + $0x14] sm:$0xf]
  %v1271 = vld [vmem:[%s1264 + $0x18] sm:$0xf]
  %v1272 = vld [vmem:[%s1264 + $0x1c] sm:$0xf]
  %v1273 = vld [vmem:[%s1264 + $0x20] sm:$0xf]
  %v1274 = vld [vmem:[%s1264 + $0x24] sm:$0x3]
  %v1275 = vld [vmem:[%s1264 + $0x28] sm:$0xf]
  %v1276 = vld [vmem:[%s1264 + $0x2c] sm:$0xf]
  %v1277 = vld [vmem:[%s1264 + $0x30] sm:$0xf]
  %v1278 = vld [vmem:[%s1264 + $0x34] sm:$0xf]
  %v1279 = vld [vmem:[%s1264 + $0x38] sm:$0x3]
  %v1280 = vld [vmem:[%s1264 + $0x3c] sm:$0xf]
  %v1281 = vld [vmem:[%s1264 + $0x40] sm:$0xf]
  %v1282 = vld [vmem:[%s1264 + $0x44] sm:$0xf]
  %v1283 = vld [vmem:[%s1264 + $0x48] sm:$0xf]
  %v1284 = vld [vmem:[%s1264 + $0x4c] sm:$0x3]
  %s1285 = scalar_lea.vmem %s2, 16
  %v1286 = vld [vmem:[%s1285] sm:$0xff]
  %v1287 = vld [vmem:[%s1285 + $0x8] sm:$0x1]
  %v1288 = vpack.c.bf16 %v1263, %v1262
  %v1289 = vlaneseq
  %v1290 = vshrl.u32 %v1289, 7
  %v1291 = vsub.s32 0, %v1290
  %v1292 = vrot.slane %v1286, %v1291
  %v1298 = vunpack.c.l.b16 %v1265
  %v1299 = vunpack.c.l.b16 %v1266
  %v1300 = vunpack.c.l.b16 %v1267
  %v1301 = vunpack.c.l.b16 %v1268
  %v1302 = vunpack.c.l.b16 %v1269
  %v1303 = vpack.c.b16 %v1299, %v1298
  %v1304 = vpack.c.b16 %v1301, %v1300
  %v1305 = vpack.c.b16 %v1302, %v1302
  %v1309 = vsel %vm250, %v1288, 0
  %v1312 = vsel %vm254, %v1305, 0
  %1314 = vmatprep.subr.bf16.mxu0 0
  %1315 = vmatpush1.bf16.msra.mxu0 %v1303
  %1316 = vmatprep.subr.bf16.mxu0 0
  %1317 = vmatpush1.bf16.msra.mxu0 %v1304
  %1318 = vmatprep.subr.bf16.mxu0 0
  %1319 = vmatpush1.bf16.msra.mxu0 %v1312
  %1320 = vmatprep.subr.bf16.mxu0 0
  %1321 = vmatpush1.bf16.msra.mxu0 0
  %1322 = vmatprep.subr.bf16.mxu0 0
  %1323 = vmatpush1.bf16.msra.mxu0 0
  %1324 = vmatprep.subr.bf16.mxu0 0
  %1325 = vmatpush1.bf16.msra.mxu0 0
  %1326 = vmatprep.subr.bf16.mxu0 0
  %1327 = vmatpush1.bf16.msra.mxu0 0
  %1328 = vmatprep.subr.bf16.mxu0 0
  %1329 = vmatpush1.bf16.msra.mxu0 0
  %1330 = vmatprep.subr.bf16.mxu0 0
  %1331 = vmatpush1.bf16.msra.mxu0 0
  %1332 = vmatprep.subr.bf16.mxu0 0
  %1333 = vmatpush1.bf16.msra.mxu0 0
  %1334 = vmatprep.subr.bf16.mxu0 0
  %1335 = vmatpush1.bf16.msra.mxu0 0
  %1336 = vmatprep.subr.bf16.mxu0 0
  %1337 = vmatpush1.bf16.msra.mxu0 0
  %1338 = vmatprep.subr.bf16.mxu0 0
  %1339 = vmatpush1.bf16.msra.mxu0 0
  %1340 = vmatprep.subr.bf16.mxu0 0
  %1341 = vmatpush1.bf16.msra.mxu0 0
  %1342 = vmatprep.subr.bf16.mxu0 0
  %1343 = vmatpush1.bf16.msra.mxu0 0
  %1344 = vmatprep.subr.bf16.mxu0 0
  %1345 = vmatpush1.bf16.msra.mxu0 0
  %1346 = vmatprep.mubr.bf16.mxu0 0
  %1347 = vmatmul.mubr.bf16.gmra.mrb[0].mxu0 %v1309
  %v1348 = vpop.f32.mrb[0].mxu0
  %v1349 = vadd.f32 %v1292, %v1348
  %v1350 = vpop.f32.mrb[0].mxu0
  %v1351 = vpop.f32.mrb[0].mxu0
  %v1352 = vadd.f32 %v1292, %v1351
  %v1353 = vpop.f32.mrb[0].mxu0
  %1354 = vdwg.mxu0
  %v1355 = vlaneseq
  %v1356 = vshrl.u32 %v1355, 7
  %v1357 = vsub.s32 1, %v1356
  %v1358 = vrot.slane %v1286, %v1357
  %v1364 = vunpack.c.l.b16 %v1270
  %v1365 = vunpack.c.l.b16 %v1271
  %v1366 = vunpack.c.l.b16 %v1272
  %v1367 = vunpack.c.l.b16 %v1273
  %v1368 = vunpack.c.l.b16 %v1274
  %v1369 = vpack.c.b16 %v1365, %v1364
  %v1370 = vpack.c.b16 %v1367, %v1366
  %v1371 = vpack.c.b16 %v1368, %v1368
  %v1375 = vsel %vm254, %v1371, 0
  %1377 = vmatprep.subr.bf16.mxu0 0
  %1378 = vmatpush1.bf16.msra.mxu0 %v1369
  %1379 = vmatprep.subr.bf16.mxu0 0
  %1380 = vmatpush1.bf16.msra.mxu0 %v1370
  %1381 = vmatprep.subr.bf16.mxu0 0
  %1382 = vmatpush1.bf16.msra.mxu0 %v1375
  %1383 = vmatprep.subr.bf16.mxu0 0
  %1384 = vmatpush1.bf16.msra.mxu0 0
  %1385 = vmatprep.subr.bf16.mxu0 0
  %1386 = vmatpush1.bf16.msra.mxu0 0
  %1387 = vmatprep.subr.bf16.mxu0 0
  %1388 = vmatpush1.bf16.msra.mxu0 0
  %1389 = vmatprep.subr.bf16.mxu0 0
  %1390 = vmatpush1.bf16.msra.mxu0 0
  %1391 = vmatprep.subr.bf16.mxu0 0
  %1392 = vmatpush1.bf16.msra.mxu0 0
  %1393 = vmatprep.subr.bf16.mxu0 0
  %1394 = vmatpush1.bf16.msra.mxu0 0
  %1395 = vmatprep.subr.bf16.mxu0 0
  %1396 = vmatpush1.bf16.msra.mxu0 0
  %1397 = vmatprep.subr.bf16.mxu0 0
  %1398 = vmatpush1.bf16.msra.mxu0 0
  %1399 = vmatprep.subr.bf16.mxu0 0
  %1400 = vmatpush1.bf16.msra.mxu0 0
  %1401 = vmatprep.subr.bf16.mxu0 0
  %1402 = vmatpush1.bf16.msra.mxu0 0
  %1403 = vmatprep.subr.bf16.mxu0 0
  %1404 = vmatpush1.bf16.msra.mxu0 0
  %1405 = vmatprep.subr.bf16.mxu0 0
  %1406 = vmatpush1.bf16.msra.mxu0 0
  %1407 = vmatprep.subr.bf16.mxu0 0
  %1408 = vmatpush1.bf16.msra.mxu0 0
  %1409 = vmatprep.mubr.bf16.mxu0 0
  %1410 = vmatmul.mubr.bf16.gmra.mrb[0].mxu0 %v1309
  %v1411 = vpop.f32.mrb[0].mxu0
  %v1412 = vadd.f32 %v1358, %v1411
  %v1413 = vpop.f32.mrb[0].mxu0
  %v1414 = vpop.f32.mrb[0].mxu0
  %v1415 = vadd.f32 %v1358, %v1414
  %v1416 = vpop.f32.mrb[0].mxu0
  %1417 = vdwg.mxu0
  %v1418 = vlaneseq
  %v1419 = vshrl.u32 %v1418, 7
  %v1420 = vsub.s32 2, %v1419
  %v1421 = vrot.slane %v1286, %v1420
  %v1427 = vunpack.c.l.b16 %v1275
  %v1428 = vunpack.c.l.b16 %v1276
  %v1429 = vunpack.c.l.b16 %v1277
  %v1430 = vunpack.c.l.b16 %v1278
  %v1431 = vunpack.c.l.b16 %v1279
  %v1432 = vpack.c.b16 %v1428, %v1427
  %v1433 = vpack.c.b16 %v1430, %v1429
  %v1434 = vpack.c.b16 %v1431, %v1431
  %v1438 = vsel %vm254, %v1434, 0
  %1440 = vmatprep.subr.bf16.mxu0 0
  %1441 = vmatpush1.bf16.msra.mxu0 %v1432
  %1442 = vmatprep.subr.bf16.mxu0 0
  %1443 = vmatpush1.bf16.msra.mxu0 %v1433
  %1444 = vmatprep.subr.bf16.mxu0 0
  %1445 = vmatpush1.bf16.msra.mxu0 %v1438
  %1446 = vmatprep.subr.bf16.mxu0 0
  %1447 = vmatpush1.bf16.msra.mxu0 0
  %1448 = vmatprep.subr.bf16.mxu0 0
  %1449 = vmatpush1.bf16.msra.mxu0 0
  %1450 = vmatprep.subr.bf16.mxu0 0
  %1451 = vmatpush1.bf16.msra.mxu0 0
  %1452 = vmatprep.subr.bf16.mxu0 0
  %1453 = vmatpush1.bf16.msra.mxu0 0
  %1454 = vmatprep.subr.bf16.mxu0 0
  %1455 = vmatpush1.bf16.msra.mxu0 0
  %1456 = vmatprep.subr.bf16.mxu0 0
  %1457 = vmatpush1.bf16.msra.mxu0 0
  %1458 = vmatprep.subr.bf16.mxu0 0
  %1459 = vmatpush1.bf16.msra.mxu0 0
  %1460 = vmatprep.subr.bf16.mxu0 0
  %1461 = vmatpush1.bf16.msra.mxu0 0
  %1462 = vmatprep.subr.bf16.mxu0 0
  %1463 = vmatpush1.bf16.msra.mxu0 0
  %1464 = vmatprep.subr.bf16.mxu0 0
  %1465 = vmatpush1.bf16.msra.mxu0 0
  %1466 = vmatprep.subr.bf16.mxu0 0
  %1467 = vmatpush1.bf16.msra.mxu0 0
  %1468 = vmatprep.subr.bf16.mxu0 0
  %1469 = vmatpush1.bf16.msra.mxu0 0
  %1470 = vmatprep.subr.bf16.mxu0 0
  %1471 = vmatpush1.bf16.msra.mxu0 0
  %1472 = vmatprep.mubr.bf16.mxu0 0
  %1473 = vmatmul.mubr.bf16.gmra.mrb[0].mxu0 %v1309
  %v1474 = vpop.f32.mrb[0].mxu0
  %v1475 = vadd.f32 %v1421, %v1474
  %v1476 = vpop.f32.mrb[0].mxu0
  %v1477 = vpop.f32.mrb[0].mxu0
  %v1478 = vadd.f32 %v1421, %v1477
  %v1479 = vpop.f32.mrb[0].mxu0
  %1480 = vdwg.mxu0
  %v1481 = vpack.c.bf16 %v1349, %v1349
  %v1482 = vpack.c.bf16 %v1352, %v1352
  %v1483 = vpack.c.bf16 %v1412, %v1412
  %v1484 = vpack.c.bf16 %v1415, %v1415
  %v1485 = vpack.c.bf16 %v1475, %v1475
  %v1486 = vpack.c.bf16 %v1478, %v1478
  %v1487 = vmul.bf16 %v1483, %v149
  %v1488 = vmul.bf16 %v1483, %v156
  %v1489 = vmul.bf16 %v1483, %v163
  %v1490 = vmul.bf16 %v1483, %v170
  %v1491 = vmul.bf16 %v1483, %v177
  %v1492 = vmul.bf16 %v1483, %v184
  %v1493 = vmul.bf16 %v1483, %v191
  %v1494 = vmul.bf16 %v1483, %v198
  %v1495 = vmul.bf16 %v1483, %v205
  %v1496 = vmul.bf16 %v1484, %v149
  %v1497 = vmul.bf16 %v1484, %v156
  %v1498 = vmul.bf16 %v1484, %v163
  %v1499 = vmul.bf16 %v1484, %v170
  %v1500 = vmul.bf16 %v1484, %v177
  %v1501 = vmul.bf16 %v1484, %v184
  %v1502 = vmul.bf16 %v1484, %v191
  %v1503 = vmul.bf16 %v1484, %v198
  %v1504 = vmul.bf16 %v1484, %v205
  %v1505 = vmul.bf16 %v1485, %v149
  %v1506 = vmul.bf16 %v1485, %v156
  %v1507 = vmul.bf16 %v1485, %v163
  %v1508 = vmul.bf16 %v1485, %v170
  %v1509 = vmul.bf16 %v1485, %v177
  %v1510 = vmul.bf16 %v1485, %v184
  %v1511 = vmul.bf16 %v1485, %v191
  %v1512 = vmul.bf16 %v1485, %v198
  %v1513 = vmul.bf16 %v1485, %v205
  %v1514 = vmul.bf16 %v1486, %v149
  %v1515 = vmul.bf16 %v1486, %v156
  %v1516 = vmul.bf16 %v1486, %v163
  %v1517 = vmul.bf16 %v1486, %v170
  %v1518 = vmul.bf16 %v1486, %v177
  %v1519 = vmul.bf16 %v1486, %v184
  %v1520 = vmul.bf16 %v1486, %v191
  %v1521 = vmul.bf16 %v1486, %v198
  %v1522 = vmul.bf16 %v1486, %v205
  %v1532 = vunpack.c.l.b16 %v1487
  %v1533 = vunpack.c.l.b16 %v1488
  %v1534 = vunpack.c.l.b16 %v1489
  %v1535 = vunpack.c.l.b16 %v1490
  %v1536 = vunpack.c.l.b16 %v1491
  %v1537 = vunpack.c.l.b16 %v1492
  %v1538 = vunpack.c.l.b16 %v1493
  %v1539 = vunpack.c.l.b16 %v1494
  %v1540 = vunpack.c.l.b16 %v1495
  %v1541 = vpack.c.b16 %v1533, %v1532
  %v1542 = vpack.c.b16 %v1535, %v1534
  %v1543 = vpack.c.b16 %v1537, %v1536
  %v1544 = vpack.c.b16 %v1539, %v1538
  %v1545 = vpack.c.b16 %v1540, %v1540
  %v1547 = vsel %vm250, %v1481, 0
  %v1550 = vsel %vm250, %v1541, 0
  %v1553 = vsel %vm250, %v1542, 0
  %v1556 = vsel %vm250, %v1543, 0
  %v1559 = vsel %vm250, %v1544, 0
  %v1562 = vsel %vm250, %v1545, 0
  %1564 = vmatprep.subr.bf16.mxu0 0
  %1565 = vmatpush1.bf16.xpose.msra.mxu0 %v1550
  %1566 = vmatprep.subr.bf16.mxu0 0
  %1567 = vmatpush1.bf16.xpose.msra.mxu0 %v1553
  %1568 = vmatprep.subr.bf16.mxu0 0
  %1569 = vmatpush1.bf16.xpose.msra.mxu0 %v1556
  %1570 = vmatprep.subr.bf16.mxu0 0
  %1571 = vmatpush1.bf16.xpose.msra.mxu0 %v1559
  %1572 = vmatprep.subr.bf16.mxu0 0
  %1573 = vmatpush1.bf16.xpose.msra.mxu0 %v1562
  %1574 = vmatprep.subr.bf16.mxu0 0
  %1575 = vmatpush1.bf16.xpose.msra.mxu0 0
  %1576 = vmatprep.subr.bf16.mxu0 0
  %1577 = vmatpush1.bf16.xpose.msra.mxu0 0
  %1578 = vmatprep.subr.bf16.mxu0 0
  %1579 = vmatpush1.bf16.xpose.msra.mxu0 0
  %1580 = vmatprep.subr.bf16.mxu0 0
  %1581 = vmatpush1.bf16.xpose.msra.mxu0 0
  %1582 = vmatprep.subr.bf16.mxu0 0
  %1583 = vmatpush1.bf16.xpose.msra.mxu0 0
  %1584 = vmatprep.subr.bf16.mxu0 0
  %1585 = vmatpush1.bf16.xpose.msra.mxu0 0
  %1586 = vmatprep.subr.bf16.mxu0 0
  %1587 = vmatpush1.bf16.xpose.msra.mxu0 0
  %1588 = vmatprep.subr.bf16.mxu0 0
  %1589 = vmatpush1.bf16.xpose.msra.mxu0 0
  %1590 = vmatprep.subr.bf16.mxu0 0
  %1591 = vmatpush1.bf16.xpose.msra.mxu0 0
  %1592 = vmatprep.subr.bf16.mxu0 0
  %1593 = vmatpush1.bf16.xpose.msra.mxu0 0
  %1594 = vmatprep.subr.bf16.mxu0 0
  %1595 = vmatpush1.bf16.xpose.msra.mxu0 0
  %1596 = vmatprep.mubr.bf16.mxu0 0
  %1597 = vmatmul.mubr.bf16.gmra.mrb[0].mxu0 %v1547
  %v1598 = vpop.f32.mrb[0].mxu0
  %v1599 = vadd.f32 0.0, %v1598
  %v1600 = vpop.f32.mrb[0].mxu0
  %v1601 = vpop.f32.mrb[0].mxu0
  %v1602 = vpop.f32.mrb[0].mxu0
  %1603 = vdwg.mxu0
  %v1613 = vunpack.c.l.b16 %v1496
  %v1614 = vunpack.c.l.b16 %v1497
  %v1615 = vunpack.c.l.b16 %v1498
  %v1616 = vunpack.c.l.b16 %v1499
  %v1617 = vunpack.c.l.b16 %v1500
  %v1618 = vunpack.c.l.b16 %v1501
  %v1619 = vunpack.c.l.b16 %v1502
  %v1620 = vunpack.c.l.b16 %v1503
  %v1621 = vunpack.c.l.b16 %v1504
  %v1622 = vpack.c.b16 %v1614, %v1613
  %v1623 = vpack.c.b16 %v1616, %v1615
  %v1624 = vpack.c.b16 %v1618, %v1617
  %v1625 = vpack.c.b16 %v1620, %v1619
  %v1626 = vpack.c.b16 %v1621, %v1621
  %v1628 = vsel %vm250, %v1482, 0
  %v1631 = vsel %vm250, %v1622, 0
  %v1634 = vsel %vm250, %v1623, 0
  %v1637 = vsel %vm250, %v1624, 0
  %v1640 = vsel %vm250, %v1625, 0
  %v1643 = vsel %vm250, %v1626, 0
  %1645 = vmatprep.subr.bf16.mxu0 0
  %1646 = vmatpush1.bf16.xpose.msra.mxu0 %v1631
  %1647 = vmatprep.subr.bf16.mxu0 0
  %1648 = vmatpush1.bf16.xpose.msra.mxu0 %v1634
  %1649 = vmatprep.subr.bf16.mxu0 0
  %1650 = vmatpush1.bf16.xpose.msra.mxu0 %v1637
  %1651 = vmatprep.subr.bf16.mxu0 0
  %1652 = vmatpush1.bf16.xpose.msra.mxu0 %v1640
  %1653 = vmatprep.subr.bf16.mxu0 0
  %1654 = vmatpush1.bf16.xpose.msra.mxu0 %v1643
  %1655 = vmatprep.subr.bf16.mxu0 0
  %1656 = vmatpush1.bf16.xpose.msra.mxu0 0
  %1657 = vmatprep.subr.bf16.mxu0 0
  %1658 = vmatpush1.bf16.xpose.msra.mxu0 0
  %1659 = vmatprep.subr.bf16.mxu0 0
  %1660 = vmatpush1.bf16.xpose.msra.mxu0 0
  %1661 = vmatprep.subr.bf16.mxu0 0
  %1662 = vmatpush1.bf16.xpose.msra.mxu0 0
  %1663 = vmatprep.subr.bf16.mxu0 0
  %1664 = vmatpush1.bf16.xpose.msra.mxu0 0
  %1665 = vmatprep.subr.bf16.mxu0 0
  %1666 = vmatpush1.bf16.xpose.msra.mxu0 0
  %1667 = vmatprep.subr.bf16.mxu0 0
  %1668 = vmatpush1.bf16.xpose.msra.mxu0 0
  %1669 = vmatprep.subr.bf16.mxu0 0
  %1670 = vmatpush1.bf16.xpose.msra.mxu0 0
  %1671 = vmatprep.subr.bf16.mxu0 0
  %1672 = vmatpush1.bf16.xpose.msra.mxu0 0
  %1673 = vmatprep.subr.bf16.mxu0 0
  %1674 = vmatpush1.bf16.xpose.msra.mxu0 0
  %1675 = vmatprep.subr.bf16.mxu0 0
  %1676 = vmatpush1.bf16.xpose.msra.mxu0 0
  %1677 = vmatprep.mubr.bf16.mxu0 0
  %1678 = vmatmul.mubr.bf16.gmra.mrb[0].mxu0 %v1628
  %v1679 = vpop.f32.mrb[0].mxu0
  %v1680 = vadd.f32 0.0, %v1679
  %v1681 = vpop.f32.mrb[0].mxu0
  %v1682 = vpop.f32.mrb[0].mxu0
  %v1683 = vpop.f32.mrb[0].mxu0
  %1684 = vdwg.mxu0
  %v1685 = vsel %vm629, %v1599, -inf
  %1686 = vmax.xlane.f32.xlu0 %v1685
  %v1687 = vpop.xlane.xlu0 %1686
  %v1688 = vsel %vm629, %v1680, -inf
  %1689 = vmax.xlane.f32.xlu0 %v1688
  %v1690 = vpop.xlane.xlu0 %1689
  %v1691 = vsub.f32 %v1599, %v1687
  %v1692 = vsub.f32 %v1680, %v1690
  %v1693 = vmul.f32 %v1691, 1.442695
  %v1694 = vpow.pop %v1693
  %v1695 = vmul.f32 %v1692, 1.442695
  %v1696 = vpow.pop %v1695
  %v1697 = vpack.c.bf16 %v1694, %v1694
  %v1698 = vpack.c.bf16 %v1696, %v1696
  %v1701 = vunpack.c.l.b16 %v1697
  %v1702 = vunpack.c.l.b16 %v1698
  %v1703 = vpack.c.b16 %v1702, %v1701
  %v1705 = vsel %vm629, %v1703, 0
  %1707 = vmatprep.subr.bf16.mxu0 0
  %1708 = vmatpush1.bf16.msra.mxu0 %v667
  %1709 = vmatprep.subr.bf16.mxu0 0
  %1710 = vmatpush1.bf16.msra.mxu0 %v668
  %1711 = vmatprep.subr.bf16.mxu0 0
  %1712 = vmatpush1.bf16.msra.mxu0 %v669
  %1713 = vmatprep.subr.bf16.mxu0 0
  %1714 = vmatpush1.bf16.msra.mxu0 %v670
  %1715 = vmatprep.subr.bf16.mxu0 0
  %1716 = vmatpush1.bf16.msra.mxu0 %v681
  %1717 = vmatprep.subr.bf16.mxu0 0
  %1718 = vmatpush1.bf16.msra.mxu0 0
  %1719 = vmatprep.subr.bf16.mxu0 0
  %1720 = vmatpush1.bf16.msra.mxu0 0
  %1721 = vmatprep.subr.bf16.mxu0 0
  %1722 = vmatpush1.bf16.msra.mxu0 0
  %1723 = vmatprep.subr.bf16.mxu0 0
  %1724 = vmatpush1.bf16.msra.mxu0 0
  %1725 = vmatprep.subr.bf16.mxu0 0
  %1726 = vmatpush1.bf16.msra.mxu0 0
  %1727 = vmatprep.subr.bf16.mxu0 0
  %1728 = vmatpush1.bf16.msra.mxu0 0
  %1729 = vmatprep.subr.bf16.mxu0 0
  %1730 = vmatpush1.bf16.msra.mxu0 0
  %1731 = vmatprep.subr.bf16.mxu0 0
  %1732 = vmatpush1.bf16.msra.mxu0 0
  %1733 = vmatprep.subr.bf16.mxu0 0
  %1734 = vmatpush1.bf16.msra.mxu0 0
  %1735 = vmatprep.subr.bf16.mxu0 0
  %1736 = vmatpush1.bf16.msra.mxu0 0
  %1737 = vmatprep.subr.bf16.mxu0 0
  %1738 = vmatpush1.bf16.msra.mxu0 0
  %1739 = vmatprep.mubr.bf16.mxu0 0
  %1740 = vmatmul.mubr.bf16.gmra.mrb[0].mxu0 %v1705
  %v1741 = vpop.f32.mrb[0].mxu0
  %v1742 = vadd.f32 0.0, %v1741
  %v1743 = vpop.f32.mrb[0].mxu0
  %v1744 = vpop.f32.mrb[0].mxu0
  %v1745 = vadd.f32 0.0, %v1744
  %v1746 = vpop.f32.mrb[0].mxu0
  %1747 = vdwg.mxu0
  %v1748 = vrcp.pop %v1742
  %v1749 = vrcp.pop %v1745
  %v1750 = vpack.c.bf16 %v1749, %v1748
  %v1760 = vunpack.c.l.b16 %v1505
  %v1761 = vunpack.c.l.b16 %v1506
  %v1762 = vunpack.c.l.b16 %v1507
  %v1763 = vunpack.c.l.b16 %v1508
  %v1764 = vunpack.c.l.b16 %v1509
  %v1765 = vunpack.c.l.b16 %v1510
  %v1766 = vunpack.c.l.b16 %v1511
  %v1767 = vunpack.c.l.b16 %v1512
  %v1768 = vunpack.c.l.b16 %v1513
  %v1769 = vpack.c.b16 %v1761, %v1760
  %v1770 = vpack.c.b16 %v1763, %v1762
  %v1771 = vpack.c.b16 %v1765, %v1764
  %v1772 = vpack.c.b16 %v1767, %v1766
  %v1773 = vpack.c.b16 %v1768, %v1768
  %v1779 = vsel %vm629, %v1697, 0
  %v1782 = vsel %vm679, %v1773, 0
  %1784 = vmatprep.subr.bf16.mxu0 0
  %1785 = vmatpush1.bf16.msra.mxu0 %v1769
  %1786 = vmatprep.subr.bf16.mxu0 0
  %1787 = vmatpush1.bf16.msra.mxu0 %v1770
  %1788 = vmatprep.subr.bf16.mxu0 0
  %1789 = vmatpush1.bf16.msra.mxu0 %v1771
  %1790 = vmatprep.subr.bf16.mxu0 0
  %1791 = vmatpush1.bf16.msra.mxu0 %v1772
  %1792 = vmatprep.subr.bf16.mxu0 0
  %1793 = vmatpush1.bf16.msra.mxu0 %v1782
  %1794 = vmatprep.subr.bf16.mxu0 0
  %1795 = vmatpush1.bf16.msra.mxu0 0
  %1796 = vmatprep.subr.bf16.mxu0 0
  %1797 = vmatpush1.bf16.msra.mxu0 0
  %1798 = vmatprep.subr.bf16.mxu0 0
  %1799 = vmatpush1.bf16.msra.mxu0 0
  %1800 = vmatprep.subr.bf16.mxu0 0
  %1801 = vmatpush1.bf16.msra.mxu0 0
  %1802 = vmatprep.subr.bf16.mxu0 0
  %1803 = vmatpush1.bf16.msra.mxu0 0
  %1804 = vmatprep.subr.bf16.mxu0 0
  %1805 = vmatpush1.bf16.msra.mxu0 0
  %1806 = vmatprep.subr.bf16.mxu0 0
  %1807 = vmatpush1.bf16.msra.mxu0 0
  %1808 = vmatprep.subr.bf16.mxu0 0
  %1809 = vmatpush1.bf16.msra.mxu0 0
  %1810 = vmatprep.subr.bf16.mxu0 0
  %1811 = vmatpush1.bf16.msra.mxu0 0
  %1812 = vmatprep.subr.bf16.mxu0 0
  %1813 = vmatpush1.bf16.msra.mxu0 0
  %1814 = vmatprep.subr.bf16.mxu0 0
  %1815 = vmatpush1.bf16.msra.mxu0 0
  %1816 = vmatprep.mubr.bf16.mxu0 0
  %1817 = vmatmul.mubr.bf16.gmra.mrb[0].mxu0 %v1779
  %v1818 = vpop.f32.mrb[0].mxu0
  %v1819 = vadd.f32 0.0, %v1818
  %v1820 = vpop.f32.mrb[0].mxu0
  %v1821 = vpop.f32.mrb[0].mxu0
  %v1822 = vpop.f32.mrb[0].mxu0
  %1823 = vdwg.mxu0
  %v1833 = vunpack.c.l.b16 %v1514
  %v1834 = vunpack.c.l.b16 %v1515
  %v1835 = vunpack.c.l.b16 %v1516
  %v1836 = vunpack.c.l.b16 %v1517
  %v1837 = vunpack.c.l.b16 %v1518
  %v1838 = vunpack.c.l.b16 %v1519
  %v1839 = vunpack.c.l.b16 %v1520
  %v1840 = vunpack.c.l.b16 %v1521
  %v1841 = vunpack.c.l.b16 %v1522
  %v1842 = vpack.c.b16 %v1834, %v1833
  %v1843 = vpack.c.b16 %v1836, %v1835
  %v1844 = vpack.c.b16 %v1838, %v1837
  %v1845 = vpack.c.b16 %v1840, %v1839
  %v1846 = vpack.c.b16 %v1841, %v1841
  %v1852 = vsel %vm629, %v1698, 0
  %v1855 = vsel %vm679, %v1846, 0
  %1857 = vmatprep.subr.bf16.mxu0 0
  %1858 = vmatpush1.bf16.msra.mxu0 %v1842
  %1859 = vmatprep.subr.bf16.mxu0 0
  %1860 = vmatpush1.bf16.msra.mxu0 %v1843
  %1861 = vmatprep.subr.bf16.mxu0 0
  %1862 = vmatpush1.bf16.msra.mxu0 %v1844
  %1863 = vmatprep.subr.bf16.mxu0 0
  %1864 = vmatpush1.bf16.msra.mxu0 %v1845
  %1865 = vmatprep.subr.bf16.mxu0 0
  %1866 = vmatpush1.bf16.msra.mxu0 %v1855
  %1867 = vmatprep.subr.bf16.mxu0 0
  %1868 = vmatpush1.bf16.msra.mxu0 0
  %1869 = vmatprep.subr.bf16.mxu0 0
  %1870 = vmatpush1.bf16.msra.mxu0 0
  %1871 = vmatprep.subr.bf16.mxu0 0
  %1872 = vmatpush1.bf16.msra.mxu0 0
  %1873 = vmatprep.subr.bf16.mxu0 0
  %1874 = vmatpush1.bf16.msra.mxu0 0
  %1875 = vmatprep.subr.bf16.mxu0 0
  %1876 = vmatpush1.bf16.msra.mxu0 0
  %1877 = vmatprep.subr.bf16.mxu0 0
  %1878 = vmatpush1.bf16.msra.mxu0 0
  %1879 = vmatprep.subr.bf16.mxu0 0
  %1880 = vmatpush1.bf16.msra.mxu0 0
  %1881 = vmatprep.subr.bf16.mxu0 0
  %1882 = vmatpush1.bf16.msra.mxu0 0
  %1883 = vmatprep.subr.bf16.mxu0 0
  %1884 = vmatpush1.bf16.msra.mxu0 0
  %1885 = vmatprep.subr.bf16.mxu0 0
  %1886 = vmatpush1.bf16.msra.mxu0 0
  %1887 = vmatprep.subr.bf16.mxu0 0
  %1888 = vmatpush1.bf16.msra.mxu0 0
  %1889 = vmatprep.mubr.bf16.mxu0 0
  %1890 = vmatmul.mubr.bf16.gmra.mrb[0].mxu0 %v1852
  %v1891 = vpop.f32.mrb[0].mxu0
  %v1892 = vadd.f32 0.0, %v1891
  %v1893 = vpop.f32.mrb[0].mxu0
  %v1894 = vpop.f32.mrb[0].mxu0
  %v1895 = vpop.f32.mrb[0].mxu0
  %1896 = vdwg.mxu0
  %v1898 = vsel %vm876, %v1750, 0
  %1900 = vmatprep.subr.bf16.mxu0 0
  %1901 = vmatpush1.bf16.msra.mxu0 %v884
  %1902 = vmatprep.subr.bf16.mxu0 0
  %1903 = vmatpush1.bf16.msra.mxu0 0
  %1904 = vmatprep.subr.bf16.mxu0 0
  %1905 = vmatpush1.bf16.msra.mxu0 0
  %1906 = vmatprep.subr.bf16.mxu0 0
  %1907 = vmatpush1.bf16.msra.mxu0 0
  %1908 = vmatprep.subr.bf16.mxu0 0
  %1909 = vmatpush1.bf16.msra.mxu0 0
  %1910 = vmatprep.subr.bf16.mxu0 0
  %1911 = vmatpush1.bf16.msra.mxu0 0
  %1912 = vmatprep.subr.bf16.mxu0 0
  %1913 = vmatpush1.bf16.msra.mxu0 0
  %1914 = vmatprep.subr.bf16.mxu0 0
  %1915 = vmatpush1.bf16.msra.mxu0 0
  %1916 = vmatprep.subr.bf16.mxu0 0
  %1917 = vmatpush1.bf16.msra.mxu0 0
  %1918 = vmatprep.subr.bf16.mxu0 0
  %1919 = vmatpush1.bf16.msra.mxu0 0
  %1920 = vmatprep.subr.bf16.mxu0 0
  %1921 = vmatpush1.bf16.msra.mxu0 0
  %1922 = vmatprep.subr.bf16.mxu0 0
  %1923 = vmatpush1.bf16.msra.mxu0 0
  %1924 = vmatprep.subr.bf16.mxu0 0
  %1925 = vmatpush1.bf16.msra.mxu0 0
  %1926 = vmatprep.subr.bf16.mxu0 0
  %1927 = vmatpush1.bf16.msra.mxu0 0
  %1928 = vmatprep.subr.bf16.mxu0 0
  %1929 = vmatpush1.bf16.msra.mxu0 0
  %1930 = vmatprep.subr.bf16.mxu0 0
  %1931 = vmatpush1.bf16.msra.mxu0 0
  %1932 = vmatprep.mubr.bf16.mxu0 0
  %1933 = vmatmul.mubr.bf16.gmra.mrb[0].mxu0 %v1898
  %v1934 = vpop.f32.mrb[0].mxu0
  %v1935 = vadd.f32 0.0, %v1934
  %v1936 = vpop.f32.mrb[0].mxu0
  %v1937 = vpop.f32.mrb[0].mxu0
  %v1938 = vadd.f32 0.0, %v1937
  %v1939 = vpop.f32.mrb[0].mxu0
  %1940 = vdwg.mxu0
  %v1941 = vmul.f32 %v1819, %v1935
  %v1942 = vmul.f32 %v1892, %v1938
  %v1943 = vpack.c.bf16 %v1942, %v1941
  %v1944 = vlaneseq
  %v1945 = vshrl.u32 %v1944, 7
  %v1946 = vsub.s32 3, %v1945
  %v1947 = vrot.slane %v1286, %v1946
  %v1953 = vunpack.c.l.b16 %v1280
  %v1954 = vunpack.c.l.b16 %v1281
  %v1955 = vunpack.c.l.b16 %v1282
  %v1956 = vunpack.c.l.b16 %v1283
  %v1957 = vunpack.c.l.b16 %v1284
  %v1958 = vpack.c.b16 %v1954, %v1953
  %v1959 = vpack.c.b16 %v1956, %v1955
  %v1960 = vpack.c.b16 %v1957, %v1957
  %v1964 = vsel %vm250, %v1943, 0
  %v1967 = vsel %vm254, %v1960, 0
  %1969 = vmatprep.subr.bf16.mxu0 0
  %1970 = vmatpush1.bf16.msra.mxu0 %v1958
  %1971 = vmatprep.subr.bf16.mxu0 0
  %1972 = vmatpush1.bf16.msra.mxu0 %v1959
  %1973 = vmatprep.subr.bf16.mxu0 0
  %1974 = vmatpush1.bf16.msra.mxu0 %v1967
  %1975 = vmatprep.subr.bf16.mxu0 0
  %1976 = vmatpush1.bf16.msra.mxu0 0
  %1977 = vmatprep.subr.bf16.mxu0 0
  %1978 = vmatpush1.bf16.msra.mxu0 0
  %1979 = vmatprep.subr.bf16.mxu0 0
  %1980 = vmatpush1.bf16.msra.mxu0 0
  %1981 = vmatprep.subr.bf16.mxu0 0
  %1982 = vmatpush1.bf16.msra.mxu0 0
  %1983 = vmatprep.subr.bf16.mxu0 0
  %1984 = vmatpush1.bf16.msra.mxu0 0
  %1985 = vmatprep.subr.bf16.mxu0 0
  %1986 = vmatpush1.bf16.msra.mxu0 0
  %1987 = vmatprep.subr.bf16.mxu0 0
  %1988 = vmatpush1.bf16.msra.mxu0 0
  %1989 = vmatprep.subr.bf16.mxu0 0
  %1990 = vmatpush1.bf16.msra.mxu0 0
  %1991 = vmatprep.subr.bf16.mxu0 0
  %1992 = vmatpush1.bf16.msra.mxu0 0
  %1993 = vmatprep.subr.bf16.mxu0 0
  %1994 = vmatpush1.bf16.msra.mxu0 0
  %1995 = vmatprep.subr.bf16.mxu0 0
  %1996 = vmatpush1.bf16.msra.mxu0 0
  %1997 = vmatprep.subr.bf16.mxu0 0
  %1998 = vmatpush1.bf16.msra.mxu0 0
  %1999 = vmatprep.subr.bf16.mxu0 0
  %2000 = vmatpush1.bf16.msra.mxu0 0
  %2001 = vmatprep.mubr.bf16.mxu0 0
  %2002 = vmatmul.mubr.bf16.gmra.mrb[0].mxu0 %v1964
  %v2003 = vpop.f32.mrb[0].mxu0
  %v2004 = vadd.f32 %v1947, %v2003
  %v2005 = vpop.f32.mrb[0].mxu0
  %v2006 = vpop.f32.mrb[0].mxu0
  %v2007 = vadd.f32 %v1947, %v2006
  %v2008 = vpop.f32.mrb[0].mxu0
  %2009 = vdwg.mxu0
  %v2010 = vadd.f32 %v1262, %v2004
  %v2011 = vadd.f32 %v1263, %v2007
  %v2012 = vsel %vm250, %v2010, 0.0
  %2013 = vadd.xlane.f32.xlu0 %v2012
  %v2014 = vpop.xlane.xlu0 %2013
  %v2015 = vsel %vm250, %v2011, 0.0
  %2016 = vadd.xlane.f32.xlu0 %v2015
  %v2017 = vpop.xlane.xlu0 %2016
  %v2018 = vmul.f32 %v2014, %v1004
  %v2019 = vmul.f32 %v2017, %v1004
  %v2020 = vsub.f32 %v2010, %v2018
  %v2021 = vsub.f32 %v2011, %v2019
  %v2022 = vmul.f32 %v2020, %v2020
  %v2023 = vmul.f32 %v2021, %v2021
  %v2024 = vsel %vm250, %v2022, 0.0
  %2025 = vadd.xlane.f32.xlu0 %v2024
  %v2026 = vpop.xlane.xlu0 %2025
  %v2027 = vsel %vm250, %v2023, 0.0
  %2028 = vadd.xlane.f32.xlu0 %v2027
  %v2029 = vpop.xlane.xlu0 %2028
  %v2030 = vmul.f32 %v2026, %v1004
  %v2031 = vmul.f32 %v2029, %v1004
  %v2032 = vadd.f32 %v2030, 1e-05
  %v2033 = vadd.f32 %v2031, 1e-05
  %v2034 = vrsqrt.pop %v2032
  %v2035 = vrsqrt.pop %v2033
  %v2036 = vmul.f32 %v2020, %v2034
  %v2037 = vmul.f32 %v2021, %v2035
  %v2038 = vlaneseq
  %v2039 = vshrl.u32 %v2038, 7
  %v2040 = vsub.s32 4, %v2039
  %v2041 = vrot.slane %v1286, %v2040
  %v2042 = vmul.f32 %v2036, %v2041
  %v2043 = vmul.f32 %v2037, %v2041
  %v2044 = vlaneseq
  %v2045 = vshrl.u32 %v2044, 7
  %v2046 = vsub.s32 5, %v2045
  %v2047 = vrot.slane %v1286, %v2046
  %v2048 = vadd.f32 %v2042, %v2047
  %v2049 = vadd.f32 %v2043, %v2047
  %v2050 = vpack.c.bf16 %v2049, %v2048
  %s2051 = scalar_lea.vmem %s3, 20
  %v2052 = vld [vmem:[%s2051] sm:$0xf]
  %v2053 = vld [vmem:[%s2051 + $0x4] sm:$0xf]
  %v2054 = vld [vmem:[%s2051 + $0x8] sm:$0xf]
  %v2055 = vld [vmem:[%s2051 + $0xc] sm:$0xf]
  %v2056 = vld [vmem:[%s2051 + $0x10] sm:$0x3]
  %s2057 = scalar_lea.vmem %s4, 1
  %v2058 = vld [vmem:[%s2057] sm:$0x1]
  %v2060 = vlaneseq
  %v2061 = vshrl.u32 %v2060, 7
  %v2062 = vsub.s32 0, %v2061
  %v2063 = vrot.slane %v2058, %v2062
  %v2070 = vunpack.c.l.b16 %v2052
  %v2071 = vunpack.c.l.b16 %v2053
  %v2072 = vunpack.c.l.b16 %v2054
  %v2073 = vunpack.c.l.b16 %v2055
  %v2074 = vunpack.c.l.b16 %v2056
  %v2075 = vpack.c.b16 %v2071, %v2070
  %v2076 = vpack.c.b16 %v2073, %v2072
  %v2077 = vpack.c.b16 %v2074, %v2074
  %v2081 = vsel %vm250, %v2050, 0
  %v2084 = vsel %vm254, %v2077, 0
  %2086 = vmatprep.subr.bf16.mxu0 0
  %2087 = vmatpush1.bf16.msra.mxu0 %v2075
  %2088 = vmatprep.subr.bf16.mxu0 0
  %2089 = vmatpush1.bf16.msra.mxu0 %v2076
  %2090 = vmatprep.subr.bf16.mxu0 0
  %2091 = vmatpush1.bf16.msra.mxu0 %v2084
  %2092 = vmatprep.subr.bf16.mxu0 0
  %2093 = vmatpush1.bf16.msra.mxu0 0
  %2094 = vmatprep.subr.bf16.mxu0 0
  %2095 = vmatpush1.bf16.msra.mxu0 0
  %2096 = vmatprep.subr.bf16.mxu0 0
  %2097 = vmatpush1.bf16.msra.mxu0 0
  %2098 = vmatprep.subr.bf16.mxu0 0
  %2099 = vmatpush1.bf16.msra.mxu0 0
  %2100 = vmatprep.subr.bf16.mxu0 0
  %2101 = vmatpush1.bf16.msra.mxu0 0
  %2102 = vmatprep.subr.bf16.mxu0 0
  %2103 = vmatpush1.bf16.msra.mxu0 0
  %2104 = vmatprep.subr.bf16.mxu0 0
  %2105 = vmatpush1.bf16.msra.mxu0 0
  %2106 = vmatprep.subr.bf16.mxu0 0
  %2107 = vmatpush1.bf16.msra.mxu0 0
  %2108 = vmatprep.subr.bf16.mxu0 0
  %2109 = vmatpush1.bf16.msra.mxu0 0
  %2110 = vmatprep.subr.bf16.mxu0 0
  %2111 = vmatpush1.bf16.msra.mxu0 0
  %2112 = vmatprep.subr.bf16.mxu0 0
  %2113 = vmatpush1.bf16.msra.mxu0 0
  %2114 = vmatprep.subr.bf16.mxu0 0
  %2115 = vmatpush1.bf16.msra.mxu0 0
  %2116 = vmatprep.subr.bf16.mxu0 0
  %2117 = vmatpush1.bf16.msra.mxu0 0
  %2118 = vmatprep.mubr.bf16.mxu0 0
  %2119 = vmatmul.mubr.bf16.gmra.mrb[0].mxu0 %v2081
  %v2120 = vpop.f32.mrb[0].mxu0
  %v2121 = vadd.f32 %v2063, %v2120
  %v2122 = vpop.f32.mrb[0].mxu0
  %v2123 = vpop.f32.mrb[0].mxu0
  %v2124 = vadd.f32 %v2063, %v2123
  %v2125 = vpop.f32.mrb[0].mxu0
  %2126 = vdwg.mxu0
  %v2127 = vmax.f32 %v2121, 0.0
  %v2128 = vmax.f32 %v2124, 0.0
  %v2129 = vpack.c.bf16 %v2128, %v2127
  %s2130 = scalar_lea.vmem %s5, 64
  %v2131 = vld [vmem:[%s2130] sm:$0xf]
  %v2132 = vld [vmem:[%s2130 + $0x4] sm:$0xf]
  %v2133 = vld [vmem:[%s2130 + $0x8] sm:$0xf]
  %v2134 = vld [vmem:[%s2130 + $0xc] sm:$0xf]
  %v2135 = vld [vmem:[%s2130 + $0x10] sm:$0xf]
  %v2136 = vld [vmem:[%s2130 + $0x14] sm:$0xf]
  %v2137 = vld [vmem:[%s2130 + $0x18] sm:$0xf]
  %v2138 = vld [vmem:[%s2130 + $0x1c] sm:$0xf]
  %v2139 = vld [vmem:[%s2130 + $0x20] sm:$0xf]
  %v2140 = vld [vmem:[%s2130 + $0x24] sm:$0xf]
  %v2141 = vld [vmem:[%s2130 + $0x28] sm:$0xf]
  %v2142 = vld [vmem:[%s2130 + $0x2c] sm:$0xf]
  %v2143 = vld [vmem:[%s2130 + $0x30] sm:$0xf]
  %v2144 = vld [vmem:[%s2130 + $0x34] sm:$0xf]
  %v2145 = vld [vmem:[%s2130 + $0x38] sm:$0xf]
  %v2146 = vld [vmem:[%s2130 + $0x3c] sm:$0xf]
  %v2147 = vlaneseq
  %v2148 = vshrl.u32 %v2147, 7
  %v2149 = vsub.s32 6, %v2148
  %v2150 = vrot.slane %v1286, %v2149
  %v2167 = vunpack.c.l.b16 %v2131
  %v2168 = vunpack.c.l.b16 %v2132
  %v2169 = vunpack.c.l.b16 %v2133
  %v2170 = vunpack.c.l.b16 %v2134
  %v2171 = vunpack.c.l.b16 %v2135
  %v2172 = vunpack.c.l.b16 %v2136
  %v2173 = vunpack.c.l.b16 %v2137
  %v2174 = vunpack.c.l.b16 %v2138
  %v2175 = vunpack.c.l.b16 %v2139
  %v2176 = vunpack.c.l.b16 %v2140
  %v2177 = vunpack.c.l.b16 %v2141
  %v2178 = vunpack.c.l.b16 %v2142
  %v2179 = vunpack.c.l.b16 %v2143
  %v2180 = vunpack.c.l.b16 %v2144
  %v2181 = vunpack.c.l.b16 %v2145
  %v2182 = vunpack.c.l.b16 %v2146
  %v2183 = vpack.c.b16 %v2168, %v2167
  %v2184 = vpack.c.b16 %v2170, %v2169
  %v2185 = vpack.c.b16 %v2172, %v2171
  %v2186 = vpack.c.b16 %v2174, %v2173
  %v2187 = vpack.c.b16 %v2176, %v2175
  %v2188 = vpack.c.b16 %v2178, %v2177
  %v2189 = vpack.c.b16 %v2180, %v2179
  %v2190 = vpack.c.b16 %v2182, %v2181
  %2199 = vmatprep.subr.bf16.mxu0 0
  %2200 = vmatpush1.bf16.msra.mxu0 %v2183
  %2201 = vmatprep.subr.bf16.mxu0 0
  %2202 = vmatpush1.bf16.msra.mxu0 %v2184
  %2203 = vmatprep.subr.bf16.mxu0 0
  %2204 = vmatpush1.bf16.msra.mxu0 %v2185
  %2205 = vmatprep.subr.bf16.mxu0 0
  %2206 = vmatpush1.bf16.msra.mxu0 %v2186
  %2207 = vmatprep.subr.bf16.mxu0 0
  %2208 = vmatpush1.bf16.msra.mxu0 %v2187
  %2209 = vmatprep.subr.bf16.mxu0 0
  %2210 = vmatpush1.bf16.msra.mxu0 %v2188
  %2211 = vmatprep.subr.bf16.mxu0 0
  %2212 = vmatpush1.bf16.msra.mxu0 %v2189
  %2213 = vmatprep.subr.bf16.mxu0 0
  %2214 = vmatpush1.bf16.msra.mxu0 %v2190
  %2215 = vmatprep.subr.bf16.mxu0 0
  %2216 = vmatpush1.bf16.msra.mxu0 0
  %2217 = vmatprep.subr.bf16.mxu0 0
  %2218 = vmatpush1.bf16.msra.mxu0 0
  %2219 = vmatprep.subr.bf16.mxu0 0
  %2220 = vmatpush1.bf16.msra.mxu0 0
  %2221 = vmatprep.subr.bf16.mxu0 0
  %2222 = vmatpush1.bf16.msra.mxu0 0
  %2223 = vmatprep.subr.bf16.mxu0 0
  %2224 = vmatpush1.bf16.msra.mxu0 0
  %2225 = vmatprep.subr.bf16.mxu0 0
  %2226 = vmatpush1.bf16.msra.mxu0 0
  %2227 = vmatprep.subr.bf16.mxu0 0
  %2228 = vmatpush1.bf16.msra.mxu0 0
  %2229 = vmatprep.subr.bf16.mxu0 0
  %2230 = vmatpush1.bf16.msra.mxu0 0
  %2231 = vmatprep.mubr.bf16.mxu0 0
  %2232 = vmatmul.mubr.bf16.gmra.mrb[0].mxu0 %v2129
  %v2233 = vpop.f32.mrb[0].mxu0
  %v2234 = vadd.f32 %v2150, %v2233
  %v2235 = vpop.f32.mrb[0].mxu0
  %v2236 = vpop.f32.mrb[0].mxu0
  %v2237 = vadd.f32 %v2150, %v2236
  %v2238 = vpop.f32.mrb[0].mxu0
  %2239 = vdwg.mxu0
  %v2240 = vadd.f32 %v2048, %v2234
  %v2241 = vadd.f32 %v2049, %v2237
  %v2242 = vsel %vm250, %v2240, 0.0
  %2243 = vadd.xlane.f32.xlu0 %v2242
  %v2244 = vpop.xlane.xlu0 %2243
  %v2245 = vsel %vm250, %v2241, 0.0
  %2246 = vadd.xlane.f32.xlu0 %v2245
  %v2247 = vpop.xlane.xlu0 %2246
  %v2248 = vmul.f32 %v2244, %v1004
  %v2249 = vmul.f32 %v2247, %v1004
  %v2250 = vsub.f32 %v2240, %v2248
  %v2251 = vsub.f32 %v2241, %v2249
  %v2252 = vmul.f32 %v2250, %v2250
  %v2253 = vmul.f32 %v2251, %v2251
  %v2254 = vsel %vm250, %v2252, 0.0
  %2255 = vadd.xlane.f32.xlu0 %v2254
  %v2256 = vpop.xlane.xlu0 %2255
  %v2257 = vsel %vm250, %v2253, 0.0
  %2258 = vadd.xlane.f32.xlu0 %v2257
  %v2259 = vpop.xlane.xlu0 %2258
  %v2260 = vmul.f32 %v2256, %v1004
  %v2261 = vmul.f32 %v2259, %v1004
  %v2262 = vadd.f32 %v2260, 1e-05
  %v2263 = vadd.f32 %v2261, 1e-05
  %v2264 = vrsqrt.pop %v2262
  %v2265 = vrsqrt.pop %v2263
  %v2266 = vmul.f32 %v2250, %v2264
  %v2267 = vmul.f32 %v2251, %v2265
  %v2268 = vlaneseq
  %v2269 = vshrl.u32 %v2268, 7
  %v2270 = vsub.s32 7, %v2269
  %v2271 = vrot.slane %v1286, %v2270
  %v2272 = vmul.f32 %v2266, %v2271
  %v2273 = vmul.f32 %v2267, %v2271
  %v2274 = vlaneseq
  %v2275 = vshrl.u32 %v2274, 7
  %v2276 = vsub.s32 0, %v2275
  %v2277 = vrot.slane %v1287, %v2276
  %v2278 = vadd.f32 %v2272, %v2277
  %v2279 = vadd.f32 %v2273, %v2277
  %v2280 = vsel %vm250, %v2278, 0.0
  %v2281 = vrot.slane %v2280, 4
  %v2282 = vadd.f32 %v2280, %v2281
  %v2283 = vrot.slane %v2282, 2
  %v2284 = vadd.f32 %v2282, %v2283
  %v2285 = vrot.slane %v2284, 1
  %v2286 = vadd.f32 %v2284, %v2285
  %v2287 = vsel %vm250, %v2279, 0.0
  %v2288 = vrot.slane %v2287, 4
  %v2289 = vadd.f32 %v2287, %v2288
  %v2290 = vrot.slane %v2289, 2
  %v2291 = vadd.f32 %v2289, %v2290
  %v2292 = vrot.slane %v2291, 1
  %v2293 = vadd.f32 %v2291, %v2292
  %v2294 = vrcp.pop 8.0
  %v2295 = vmul.f32 %v2286, %v2294
  %v2296 = vmul.f32 %v2293, %v2294
  %v2297 = vld [vmem:[%s8] sm:$0x1]
  %v2299 = vlaneseq
  %v2300 = vshrl.u32 %v2299, 7
  %v2301 = vsub.s32 0, %v2300
  %v2302 = vrot.slane %v2297, %v2301
  %v2304 = vmul.f32 %v2295, %v2302
  %v2305 = vmul.f32 %v2296, %v2302
  %v2308 = vrot.slane %v2305, 7
  %vm2309 = vcmask 1041409
  %v2310 = vsel %vm2309, %v2308, %v2304
  %vm2312 = vcmask 287744
  %v2313 = vsel %vm2312, %v2310, 0.0
  %2314 = vadd.xlane.f32.xlu0 %v2313
  %v2315 = vpop.xlane.xlu0 %2314
  %v2316 = vld [vmem:[#allocation2] sm:$0x1]
  %v2318 = vlaneseq
  %v2319 = vshrl.u32 %v2318, 7
  %v2320 = vsub.s32 0, %v2319
  %v2321 = vrot.slane %v2316, %v2320
  %v2323 = vadd.f32 %v2315, %v2321
  %vm2324 = vcmask 1024
  %2325 = vst.msk [vmem:[%s10] sm:$0x3] %vm2324, %v2323
  // Predicated region
  $region42: #{tpu_custom_call.1} parent=0 // pred_check
    _
  $region43: #{tpu_custom_call.1} parent=0 // pred_check_branch
    %2327 = sbr.rel (0) target = $region45
  $region44: #{tpu_custom_call.1} parent=0 // pred_region
    _
  $region45: #{tpu_custom_call.1} parent=0 // pred_fallthru
    _
  // Predicated region
  $region46: #{tpu_custom_call.1} parent=0 // pred_check
    _
  $region47: #{tpu_custom_call.1} parent=0 // pred_check_branch
    %2329 = sbr.rel (0) target = $region49
  $region48: #{tpu_custom_call.1} parent=0 // pred_region
    _
  $region49: #{tpu_custom_call.1} parent=0 // pred_fallthru
    _

</llo_original>
